<compile_context>
chip_gen: v7x
topology: tpu7x:2x2x1
jax: 0.10.0
libtpu: 0.0.40
codegen_flags: <defaults>
</compile_context>

<pallas_src>
import math
import functools

import jax
import jax.numpy as jnp
from jax.experimental import pallas as pl
from jax.experimental.pallas import tpu as pltpu

# ----------------------- model hyper-parameters -----------------------
BATCH = 2
SEQ = 8
NUM_HIDDENS = 32
FFN_NUM_HIDDENS = 64
NUM_HEADS = 4
HEAD_DIM = NUM_HIDDENS // NUM_HEADS
LN_EPS = 1e-5
MASK_VALUE = -1000000.0      # matches masked_softmax's fill value exactly
VEC_LANES = 128              # lane padding for the packed small-vector slab


def _layernorm(z, gamma, beta):
    mu = jnp.mean(z, axis=-1, keepdims=True)
    var = jnp.mean((z - mu) * (z - mu), axis=-1, keepdims=True)
    return (z - mu) * jax.lax.rsqrt(var + LN_EPS) * gamma + beta


def encoder_block_kernel(
    x_ref,        # (T, H)     flattened tokens
    wqkv_ref,     # (3H, H)    rows = [q feats (pre-scaled) | k feats | v feats]
    wo_ref,       # (H, H)     output projection (in, out) layout
    w1_ref,       # (H, F)     FFN dense1 weight
    w2_ref,       # (F, H)     FFN dense2 weight
    mask_ref,     # (T, T)     additive attention mask (0 / -1e6)
    vec_ref,      # (6, 128)   ln1_g, ln1_b, b1, b2, ln2_g, ln2_b (lane padded)
    out_ref,      # (T, H)
    *, num_heads,
):
    T, H = x_ref.shape
    F = w1_ref.shape[1]
    head_dim = H // num_heads

    x = x_ref[...]                                      # (T, H) f32
    mask = mask_ref[...]                                # (T, T) additive mask

    # ---- Q/K/V projection: ONE wide MXU matmul (trans-B form) ----
    # qkvT[i, t] = sum_j wqkv[i, j] * x[t, j]   -> feature-major (3H, T)
    qkvT = jax.lax.dot_general(
        wqkv_ref[...], x, (((1,), (1,)), ((), ())),
        preferred_element_type=jnp.float32)             # (3H, T)

    # ---- per-head scaled dot-product attention ----
    # Static unrolled loop over sublane-tile-aligned (HD, T) views; heads never
    # touch the lane dimension (no lane slices, no lane concat).  Each
    # iteration is pure MXU work; cross-batch / padded keys are killed by the
    # additive -1e6 mask (exp underflows to exactly 0 in f32, identical to the
    # reference masked_softmax given valid_lens >= 1).
    ctx_rows = []
    for h in range(num_heads):
        lo = h * head_dim
        qh = qkvT[lo:lo + head_dim, :]                  # (HD, T)
        kh = qkvT[H + lo:H + lo + head_dim, :]          # (HD, T)
        vh = qkvT[2 * H + lo:2 * H + lo + head_dim, :]  # (HD, T)

        # scores[s, t] = sum_d q[s,d] k[t,d]; 1/sqrt(HD) already in wq rows.
        s = jnp.dot(qh.T, kh, preferred_element_type=jnp.float32)   # (T, T)
        s = s + mask
        m = jnp.max(s, axis=-1, keepdims=True)
        p = jnp.exp(s - m)
        attn = p / jnp.sum(p, axis=-1, keepdims=True)   # exact softmax (parity)

        # ctxT[d, s] = sum_t v[t,d] * attn[s,t]  (trans-B dot, no transpose)
        ctx_rows.append(
            jax.lax.dot_general(vh, attn, (((1,), (1,)), ((), ())),
                                preferred_element_type=jnp.float32))  # (HD, T)

    # head-major feature rows, identical ordering to transpose_output's concat
    ctxT = jnp.concatenate(ctx_rows, axis=0)            # (H, T)

    # ---- head merge + W_o fused into ONE matmul contracting K = NH*HD = H ----
    attn_out = jnp.dot(ctxT.T, wo_ref[...],
                       preferred_element_type=jnp.float32)           # (T, H)

    # ---- unpack small vector params from the packed slab ----
    vec = vec_ref[...]
    g1, b1 = vec[0:1, :H], vec[1:2, :H]
    bb1, bb2 = vec[2:3, :F], vec[3:4, :H]
    g2, b2 = vec[4:5, :H], vec[5:6, :H]

    # ---- AddNorm 1 (dropout == identity at inference) ----
    y = _layernorm(x + attn_out, g1, b1)

    # ---- position-wise FFN ----
    h1 = jnp.dot(y, w1_ref[...], preferred_element_type=jnp.float32) + bb1
    h1 = jnp.maximum(h1, 0.0)
    ffn = jnp.dot(h1, w2_ref[...], preferred_element_type=jnp.float32) + bb2

    # ---- AddNorm 2 ----
    z = _layernorm(y + ffn, g2, b2)
    out_ref[...] = z.astype(out_ref.dtype)


@jax.jit
def transformer_encoder_block(x, valid_lens, params):
    B, S, H = x.shape
    NH = NUM_HEADS
    HD = H // NH
    T = B * S
    F = params["w1"].shape[1]
    assert H <= VEC_LANES and F <= VEC_LANES

    # ---------- layout plumbing (XLA, outside the kernel, free) ----------
    x2 = x.reshape(T, H)

    # packed, transposed QKV weights; 1/sqrt(HD) folded into the q rows
    scale = 1.0 / math.sqrt(HD)
    wqkv_t = jnp.concatenate(
        [params["wq"].T * scale, params["wk"].T, params["wv"].T],
        axis=0).astype(jnp.float32)                               # (3H, H)

    # additive (T, T) attention mask over the flattened token axis
    # NOTE: if some valid_lens[b] == 0 the d2l reference degenerates to a
    # uniform average over that row's S padded keys; here it would average
    # over all B*S keys.  valid_lens >= 1 is assumed (as in d2l usage).
    batch_ids = jnp.repeat(jnp.arange(B, dtype=jnp.int32), S)     # (T,)
    pos = jnp.tile(jnp.arange(S, dtype=jnp.int32), B)             # (T,)
    key_valid = pos < valid_lens.astype(jnp.int32)[batch_ids]     # (T,)
    ok = (batch_ids[:, None] == batch_ids[None, :]) & key_valid[None, :]
    mask = jnp.where(ok, 0.0, MASK_VALUE).astype(jnp.float32)     # (T, T)

    # pack all small vector params into one lane-padded slab
    def _row(v):
        v = v.reshape(-1).astype(jnp.float32)
        return jnp.pad(v, (0, VEC_LANES - v.shape[0]))
    vec = jnp.stack([_row(params["ln1_g"]), _row(params["ln1_b"]),
                     _row(params["b1"]), _row(params["b2"]),
                     _row(params["ln2_g"]), _row(params["ln2_b"])], axis=0)

    vmem = pl.BlockSpec(memory_space=pltpu.MemorySpace.VMEM)
    kernel = functools.partial(encoder_block_kernel, num_heads=NH)

    # TODO(synk): nn.Dropout layers are identity here (inference semantics).
    out2 = pl.pallas_call(
        kernel,
        out_shape=jax.ShapeDtypeStruct((T, H), x.dtype),
        in_specs=[vmem] * 7,
        out_specs=vmem,
    )(x2, wqkv_t, params["wo"].astype(jnp.float32),
      params["w1"].astype(jnp.float32), params["w2"].astype(jnp.float32),
      mask, vec)
    return out2.reshape(B, S, H)


def init_params(key, H, F):
    keys = jax.random.split(key, 8)
    scale = 0.1
    return {
        # (in, out) layout, applied as x @ W (PyTorch nn.Linear weight is
        # (out, in) applied as x @ W.T — transpose when porting checkpoints).
        "wq": scale * jax.random.normal(keys[0], (H, H), jnp.float32),
        "wk": scale * jax.random.normal(keys[1], (H, H), jnp.float32),
        "wv": scale * jax.random.normal(keys[2], (H, H), jnp.float32),
        "wo": scale * jax.random.normal(keys[3], (H, H), jnp.float32),
        "w1": scale * jax.random.normal(keys[4], (H, F), jnp.float32),
        "b1": scale * jax.random.normal(keys[5], (1, F), jnp.float32),
        "w2": scale * jax.random.normal(keys[6], (F, H), jnp.float32),
        "b2": scale * jax.random.normal(keys[7], (1, H), jnp.float32),
        # LayerNorm default init (weight=1, bias=0)
        "ln1_g": jnp.ones((1, H), jnp.float32),
        "ln1_b": jnp.zeros((1, H), jnp.float32),
        "ln2_g": jnp.ones((1, H), jnp.float32),
        "ln2_b": jnp.zeros((1, H), jnp.float32),
    }


if __name__ == "__main__":
    key = jax.random.PRNGKey(0)
    k_x, k_p = jax.random.split(key)

    x = jax.random.normal(k_x, (BATCH, SEQ, NUM_HIDDENS), jnp.float32)
    valid_lens = jnp.array([5, 8], jnp.int32)          # (batch,)
    params = init_params(k_p, NUM_HIDDENS, FFN_NUM_HIDDENS)

    out = transformer_encoder_block(x, valid_lens, params)
    out = jax.block_until_ready(out)
    assert out.shape == (BATCH, SEQ, NUM_HIDDENS)
    assert jnp.all(jnp.isfinite(out))
    print("KERNEL_OK")
</pallas_src>

<mosaic_0001>
module attributes {stable_mosaic.version = 11 : i64} {
  func.func @encoder_block_kernel(%arg0: memref<16x32xf32, #tpu.memory_space<vmem>>, %arg1: memref<96x32xf32, #tpu.memory_space<vmem>>, %arg2: memref<32x32xf32, #tpu.memory_space<vmem>>, %arg3: memref<32x64xf32, #tpu.memory_space<vmem>>, %arg4: memref<64x32xf32, #tpu.memory_space<vmem>>, %arg5: memref<16x16xf32, #tpu.memory_space<vmem>>, %arg6: memref<6x128xf32, #tpu.memory_space<vmem>>, %arg7: memref<16x32xf32, #tpu.memory_space<vmem>>) attributes {dimension_semantics = [], scalar_prefetch = 0 : i64, scratch_operands = 0 : i64, tpu.core_type = #tpu.core_type<tc>} {
    %c0 = arith.constant 0 : index
    %c0_0 = arith.constant 0 : index
    %0 = vector.load %arg0[%c0, %c0_0] : memref<16x32xf32, #tpu.memory_space<vmem>>, vector<16x32xf32>
    %c0_1 = arith.constant 0 : index
    %c0_2 = arith.constant 0 : index
    %1 = vector.load %arg5[%c0_1, %c0_2] : memref<16x16xf32, #tpu.memory_space<vmem>>, vector<16x16xf32>
    %c0_3 = arith.constant 0 : index
    %c0_4 = arith.constant 0 : index
    %2 = vector.load %arg1[%c0_3, %c0_4] : memref<96x32xf32, #tpu.memory_space<vmem>>, vector<96x32xf32>
    %cst = arith.constant dense<0.000000e+00> : vector<96x16xf32>
    %3 = tpu.matmul %2, %0, %cst {dimension_numbers = #tpu.dot_dimension_numbers<[1], [1], [0], [0], [0, 0, 1, 0], [], []>} : vector<96x32xf32>, vector<16x32xf32>, vector<96x16xf32> -> vector<96x16xf32>
    %4 = vector.extract_strided_slice %3 {offsets = [0, 0], sizes = [8, 16], strides = [1, 1]} : vector<96x16xf32> to vector<8x16xf32>
    %5 = vector.extract_strided_slice %3 {offsets = [32, 0], sizes = [8, 16], strides = [1, 1]} : vector<96x16xf32> to vector<8x16xf32>
    %6 = vector.extract_strided_slice %3 {offsets = [64, 0], sizes = [8, 16], strides = [1, 1]} : vector<96x16xf32> to vector<8x16xf32>
    %7 = tpu.transpose %4, [1, 0] : vector<8x16xf32> -> vector<16x8xf32>
    %cst_5 = arith.constant dense<0.000000e+00> : vector<16x16xf32>
    %8 = tpu.matmul %7, %5, %cst_5 {dimension_numbers = #tpu.dot_dimension_numbers<[1], [0], [0], [1], [0, 0, 1, 1], [], []>} : vector<16x8xf32>, vector<8x16xf32>, vector<16x16xf32> -> vector<16x16xf32>
    %9 = arith.addf %8, %1 : vector<16x16xf32>
    %cst_6 = arith.constant dense<0xFF800000> : vector<16xf32>
    %10 = vector.multi_reduction <maximumf>, %9, %cst_6 [1] : vector<16x16xf32> to vector<16xf32>
    %11 = vector.shape_cast %10 : vector<16xf32> to vector<16x1xf32>
    %12 = vector.broadcast %11 : vector<16x1xf32> to vector<16x16xf32>
    %13 = arith.subf %9, %12 : vector<16x16xf32>
    %14 = math.exp %13 : vector<16x16xf32>
    %cst_7 = arith.constant dense<0.000000e+00> : vector<16xf32>
    %15 = vector.multi_reduction <add>, %14, %cst_7 [1] : vector<16x16xf32> to vector<16xf32>
    %16 = vector.shape_cast %15 : vector<16xf32> to vector<16x1xf32>
    %17 = vector.broadcast %16 : vector<16x1xf32> to vector<16x16xf32>
    %18 = arith.divf %14, %17 : vector<16x16xf32>
    %cst_8 = arith.constant dense<0.000000e+00> : vector<8x16xf32>
    %19 = tpu.matmul %6, %18, %cst_8 {dimension_numbers = #tpu.dot_dimension_numbers<[1], [1], [0], [0], [0, 0, 1, 0], [], []>} : vector<8x16xf32>, vector<16x16xf32>, vector<8x16xf32> -> vector<8x16xf32>
    %20 = vector.extract_strided_slice %3 {offsets = [8, 0], sizes = [8, 16], strides = [1, 1]} : vector<96x16xf32> to vector<8x16xf32>
    %21 = vector.extract_strided_slice %3 {offsets = [40, 0], sizes = [8, 16], strides = [1, 1]} : vector<96x16xf32> to vector<8x16xf32>
    %22 = vector.extract_strided_slice %3 {offsets = [72, 0], sizes = [8, 16], strides = [1, 1]} : vector<96x16xf32> to vector<8x16xf32>
    %23 = tpu.transpose %20, [1, 0] : vector<8x16xf32> -> vector<16x8xf32>
    %cst_9 = arith.constant dense<0.000000e+00> : vector<16x16xf32>
    %24 = tpu.matmul %23, %21, %cst_9 {dimension_numbers = #tpu.dot_dimension_numbers<[1], [0], [0], [1], [0, 0, 1, 1], [], []>} : vector<16x8xf32>, vector<8x16xf32>, vector<16x16xf32> -> vector<16x16xf32>
    %25 = arith.addf %24, %1 : vector<16x16xf32>
    %cst_10 = arith.constant dense<0xFF800000> : vector<16xf32>
    %26 = vector.multi_reduction <maximumf>, %25, %cst_10 [1] : vector<16x16xf32> to vector<16xf32>
    %27 = vector.shape_cast %26 : vector<16xf32> to vector<16x1xf32>
    %28 = vector.broadcast %27 : vector<16x1xf32> to vector<16x16xf32>
    %29 = arith.subf %25, %28 : vector<16x16xf32>
    %30 = math.exp %29 : vector<16x16xf32>
    %cst_11 = arith.constant dense<0.000000e+00> : vector<16xf32>
    %31 = vector.multi_reduction <add>, %30, %cst_11 [1] : vector<16x16xf32> to vector<16xf32>
    %32 = vector.shape_cast %31 : vector<16xf32> to vector<16x1xf32>
    %33 = vector.broadcast %32 : vector<16x1xf32> to vector<16x16xf32>
    %34 = arith.divf %30, %33 : vector<16x16xf32>
    %cst_12 = arith.constant dense<0.000000e+00> : vector<8x16xf32>
    %35 = tpu.matmul %22, %34, %cst_12 {dimension_numbers = #tpu.dot_dimension_numbers<[1], [1], [0], [0], [0, 0, 1, 0], [], []>} : vector<8x16xf32>, vector<16x16xf32>, vector<8x16xf32> -> vector<8x16xf32>
    %36 = vector.extract_strided_slice %3 {offsets = [16, 0], sizes = [8, 16], strides = [1, 1]} : vector<96x16xf32> to vector<8x16xf32>
    %37 = vector.extract_strided_slice %3 {offsets = [48, 0], sizes = [8, 16], strides = [1, 1]} : vector<96x16xf32> to vector<8x16xf32>
    %38 = vector.extract_strided_slice %3 {offsets = [80, 0], sizes = [8, 16], strides = [1, 1]} : vector<96x16xf32> to vector<8x16xf32>
    %39 = tpu.transpose %36, [1, 0] : vector<8x16xf32> -> vector<16x8xf32>
    %cst_13 = arith.constant dense<0.000000e+00> : vector<16x16xf32>
    %40 = tpu.matmul %39, %37, %cst_13 {dimension_numbers = #tpu.dot_dimension_numbers<[1], [0], [0], [1], [0, 0, 1, 1], [], []>} : vector<16x8xf32>, vector<8x16xf32>, vector<16x16xf32> -> vector<16x16xf32>
    %41 = arith.addf %40, %1 : vector<16x16xf32>
    %cst_14 = arith.constant dense<0xFF800000> : vector<16xf32>
    %42 = vector.multi_reduction <maximumf>, %41, %cst_14 [1] : vector<16x16xf32> to vector<16xf32>
    %43 = vector.shape_cast %42 : vector<16xf32> to vector<16x1xf32>
    %44 = vector.broadcast %43 : vector<16x1xf32> to vector<16x16xf32>
    %45 = arith.subf %41, %44 : vector<16x16xf32>
    %46 = math.exp %45 : vector<16x16xf32>
    %cst_15 = arith.constant dense<0.000000e+00> : vector<16xf32>
    %47 = vector.multi_reduction <add>, %46, %cst_15 [1] : vector<16x16xf32> to vector<16xf32>
    %48 = vector.shape_cast %47 : vector<16xf32> to vector<16x1xf32>
    %49 = vector.broadcast %48 : vector<16x1xf32> to vector<16x16xf32>
    %50 = arith.divf %46, %49 : vector<16x16xf32>
    %cst_16 = arith.constant dense<0.000000e+00> : vector<8x16xf32>
    %51 = tpu.matmul %38, %50, %cst_16 {dimension_numbers = #tpu.dot_dimension_numbers<[1], [1], [0], [0], [0, 0, 1, 0], [], []>} : vector<8x16xf32>, vector<16x16xf32>, vector<8x16xf32> -> vector<8x16xf32>
    %52 = vector.extract_strided_slice %3 {offsets = [24, 0], sizes = [8, 16], strides = [1, 1]} : vector<96x16xf32> to vector<8x16xf32>
    %53 = vector.extract_strided_slice %3 {offsets = [56, 0], sizes = [8, 16], strides = [1, 1]} : vector<96x16xf32> to vector<8x16xf32>
    %54 = vector.extract_strided_slice %3 {offsets = [88, 0], sizes = [8, 16], strides = [1, 1]} : vector<96x16xf32> to vector<8x16xf32>
    %55 = tpu.transpose %52, [1, 0] : vector<8x16xf32> -> vector<16x8xf32>
    %cst_17 = arith.constant dense<0.000000e+00> : vector<16x16xf32>
    %56 = tpu.matmul %55, %53, %cst_17 {dimension_numbers = #tpu.dot_dimension_numbers<[1], [0], [0], [1], [0, 0, 1, 1], [], []>} : vector<16x8xf32>, vector<8x16xf32>, vector<16x16xf32> -> vector<16x16xf32>
    %57 = arith.addf %56, %1 : vector<16x16xf32>
    %cst_18 = arith.constant dense<0xFF800000> : vector<16xf32>
    %58 = vector.multi_reduction <maximumf>, %57, %cst_18 [1] : vector<16x16xf32> to vector<16xf32>
    %59 = vector.shape_cast %58 : vector<16xf32> to vector<16x1xf32>
    %60 = vector.broadcast %59 : vector<16x1xf32> to vector<16x16xf32>
    %61 = arith.subf %57, %60 : vector<16x16xf32>
    %62 = math.exp %61 : vector<16x16xf32>
    %cst_19 = arith.constant dense<0.000000e+00> : vector<16xf32>
    %63 = vector.multi_reduction <add>, %62, %cst_19 [1] : vector<16x16xf32> to vector<16xf32>
    %64 = vector.shape_cast %63 : vector<16xf32> to vector<16x1xf32>
    %65 = vector.broadcast %64 : vector<16x1xf32> to vector<16x16xf32>
    %66 = arith.divf %62, %65 : vector<16x16xf32>
    %cst_20 = arith.constant dense<0.000000e+00> : vector<8x16xf32>
    %67 = tpu.matmul %54, %66, %cst_20 {dimension_numbers = #tpu.dot_dimension_numbers<[1], [1], [0], [0], [0, 0, 1, 0], [], []>} : vector<8x16xf32>, vector<16x16xf32>, vector<8x16xf32> -> vector<8x16xf32>
    %68 = tpu.concatenate %19, %35, %51, %67 in 0 : vector<8x16xf32>, vector<8x16xf32>, vector<8x16xf32>, vector<8x16xf32> -> vector<32x16xf32>
    %69 = tpu.transpose %68, [1, 0] : vector<32x16xf32> -> vector<16x32xf32>
    %c0_21 = arith.constant 0 : index
    %c0_22 = arith.constant 0 : index
    %70 = vector.load %arg2[%c0_21, %c0_22] : memref<32x32xf32, #tpu.memory_space<vmem>>, vector<32x32xf32>
    %cst_23 = arith.constant dense<0.000000e+00> : vector<16x32xf32>
    %71 = tpu.matmul %69, %70, %cst_23 {dimension_numbers = #tpu.dot_dimension_numbers<[1], [0], [0], [1], [0, 0, 1, 1], [], []>} : vector<16x32xf32>, vector<32x32xf32>, vector<16x32xf32> -> vector<16x32xf32>
    %c0_24 = arith.constant 0 : index
    %c0_25 = arith.constant 0 : index
    %72 = vector.load %arg6[%c0_24, %c0_25] : memref<6x128xf32, #tpu.memory_space<vmem>>, vector<6x128xf32>
    %73 = vector.extract_strided_slice %72 {offsets = [0, 0], sizes = [1, 32], strides = [1, 1]} : vector<6x128xf32> to vector<1x32xf32>
    %74 = vector.extract_strided_slice %72 {offsets = [1, 0], sizes = [1, 32], strides = [1, 1]} : vector<6x128xf32> to vector<1x32xf32>
    %75 = vector.extract_strided_slice %72 {offsets = [2, 0], sizes = [1, 64], strides = [1, 1]} : vector<6x128xf32> to vector<1x64xf32>
    %76 = vector.extract_strided_slice %72 {offsets = [3, 0], sizes = [1, 32], strides = [1, 1]} : vector<6x128xf32> to vector<1x32xf32>
    %77 = vector.extract_strided_slice %72 {offsets = [4, 0], sizes = [1, 32], strides = [1, 1]} : vector<6x128xf32> to vector<1x32xf32>
    %78 = vector.extract_strided_slice %72 {offsets = [5, 0], sizes = [1, 32], strides = [1, 1]} : vector<6x128xf32> to vector<1x32xf32>
    %79 = arith.addf %0, %71 : vector<16x32xf32>
    %cst_26 = arith.constant dense<0.000000e+00> : vector<16xf32>
    %80 = vector.multi_reduction <add>, %79, %cst_26 [1] : vector<16x32xf32> to vector<16xf32>
    %81 = vector.shape_cast %80 : vector<16xf32> to vector<16x1xf32>
    %cst_27 = arith.constant 3.200000e+01 : f32
    %82 = vector.broadcast %cst_27 : f32 to vector<16x1xf32>
    %83 = arith.divf %81, %82 : vector<16x1xf32>
    %84 = vector.broadcast %83 : vector<16x1xf32> to vector<16x32xf32>
    %85 = arith.subf %79, %84 : vector<16x32xf32>
    %86 = vector.broadcast %83 : vector<16x1xf32> to vector<16x32xf32>
    %87 = arith.subf %79, %86 : vector<16x32xf32>
    %88 = arith.mulf %85, %87 : vector<16x32xf32>
    %cst_28 = arith.constant dense<0.000000e+00> : vector<16xf32>
    %89 = vector.multi_reduction <add>, %88, %cst_28 [1] : vector<16x32xf32> to vector<16xf32>
    %90 = vector.shape_cast %89 : vector<16xf32> to vector<16x1xf32>
    %cst_29 = arith.constant 3.200000e+01 : f32
    %91 = vector.broadcast %cst_29 : f32 to vector<16x1xf32>
    %92 = arith.divf %90, %91 : vector<16x1xf32>
    %93 = vector.broadcast %83 : vector<16x1xf32> to vector<16x32xf32>
    %94 = arith.subf %79, %93 : vector<16x32xf32>
    %cst_30 = arith.constant 9.99999974E-6 : f32
    %95 = vector.broadcast %cst_30 : f32 to vector<16x1xf32>
    %96 = arith.addf %92, %95 : vector<16x1xf32>
    %97 = math.rsqrt %96 : vector<16x1xf32>
    %98 = vector.broadcast %97 : vector<16x1xf32> to vector<16x32xf32>
    %99 = arith.mulf %94, %98 : vector<16x32xf32>
    %100 = vector.broadcast %73 : vector<1x32xf32> to vector<16x32xf32>
    %101 = arith.mulf %99, %100 : vector<16x32xf32>
    %102 = vector.broadcast %74 : vector<1x32xf32> to vector<16x32xf32>
    %103 = arith.addf %101, %102 : vector<16x32xf32>
    %c0_31 = arith.constant 0 : index
    %c0_32 = arith.constant 0 : index
    %104 = vector.load %arg3[%c0_31, %c0_32] : memref<32x64xf32, #tpu.memory_space<vmem>>, vector<32x64xf32>
    %cst_33 = arith.constant dense<0.000000e+00> : vector<16x64xf32>
    %105 = tpu.matmul %103, %104, %cst_33 {dimension_numbers = #tpu.dot_dimension_numbers<[1], [0], [0], [1], [0, 0, 1, 1], [], []>} : vector<16x32xf32>, vector<32x64xf32>, vector<16x64xf32> -> vector<16x64xf32>
    %106 = vector.broadcast %75 : vector<1x64xf32> to vector<16x64xf32>
    %107 = arith.addf %105, %106 : vector<16x64xf32>
    %cst_34 = arith.constant 0.000000e+00 : f32
    %108 = vector.broadcast %cst_34 : f32 to vector<16x64xf32>
    %109 = arith.maximumf %107, %108 : vector<16x64xf32>
    %c0_35 = arith.constant 0 : index
    %c0_36 = arith.constant 0 : index
    %110 = vector.load %arg4[%c0_35, %c0_36] : memref<64x32xf32, #tpu.memory_space<vmem>>, vector<64x32xf32>
    %cst_37 = arith.constant dense<0.000000e+00> : vector<16x32xf32>
    %111 = tpu.matmul %109, %110, %cst_37 {dimension_numbers = #tpu.dot_dimension_numbers<[1], [0], [0], [1], [0, 0, 1, 1], [], []>} : vector<16x64xf32>, vector<64x32xf32>, vector<16x32xf32> -> vector<16x32xf32>
    %112 = vector.broadcast %76 : vector<1x32xf32> to vector<16x32xf32>
    %113 = arith.addf %111, %112 : vector<16x32xf32>
    %114 = arith.addf %103, %113 : vector<16x32xf32>
    %cst_38 = arith.constant dense<0.000000e+00> : vector<16xf32>
    %115 = vector.multi_reduction <add>, %114, %cst_38 [1] : vector<16x32xf32> to vector<16xf32>
    %116 = vector.shape_cast %115 : vector<16xf32> to vector<16x1xf32>
    %cst_39 = arith.constant 3.200000e+01 : f32
    %117 = vector.broadcast %cst_39 : f32 to vector<16x1xf32>
    %118 = arith.divf %116, %117 : vector<16x1xf32>
    %119 = vector.broadcast %118 : vector<16x1xf32> to vector<16x32xf32>
    %120 = arith.subf %114, %119 : vector<16x32xf32>
    %121 = vector.broadcast %118 : vector<16x1xf32> to vector<16x32xf32>
    %122 = arith.subf %114, %121 : vector<16x32xf32>
    %123 = arith.mulf %120, %122 : vector<16x32xf32>
    %cst_40 = arith.constant dense<0.000000e+00> : vector<16xf32>
    %124 = vector.multi_reduction <add>, %123, %cst_40 [1] : vector<16x32xf32> to vector<16xf32>
    %125 = vector.shape_cast %124 : vector<16xf32> to vector<16x1xf32>
    %cst_41 = arith.constant 3.200000e+01 : f32
    %126 = vector.broadcast %cst_41 : f32 to vector<16x1xf32>
    %127 = arith.divf %125, %126 : vector<16x1xf32>
    %128 = vector.broadcast %118 : vector<16x1xf32> to vector<16x32xf32>
    %129 = arith.subf %114, %128 : vector<16x32xf32>
    %cst_42 = arith.constant 9.99999974E-6 : f32
    %130 = vector.broadcast %cst_42 : f32 to vector<16x1xf32>
    %131 = arith.addf %127, %130 : vector<16x1xf32>
    %132 = math.rsqrt %131 : vector<16x1xf32>
    %133 = vector.broadcast %132 : vector<16x1xf32> to vector<16x32xf32>
    %134 = arith.mulf %129, %133 : vector<16x32xf32>
    %135 = vector.broadcast %77 : vector<1x32xf32> to vector<16x32xf32>
    %136 = arith.mulf %134, %135 : vector<16x32xf32>
    %137 = vector.broadcast %78 : vector<1x32xf32> to vector<16x32xf32>
    %138 = arith.addf %136, %137 : vector<16x32xf32>
    %c0_43 = arith.constant 0 : index
    %c0_44 = arith.constant 0 : index
    %139 = vector.load %arg7[%c0_43, %c0_44] : memref<16x32xf32, #tpu.memory_space<vmem>>, vector<16x32xf32>
    tpu.vector_store %arg7[%c0_43, %c0_44], %138 {strides = array<i32>} : memref<16x32xf32, #tpu.memory_space<vmem>>, vector<16x32xf32>,
    return
  }
}

</mosaic_0001>

<llo_original>
// kernel: eq.8
$region0: #{eq.8}
  %s0 = inlined_call_operand.vmem [shape: s32[2,8], index: 0, kind: input, shape index: {}]
  %s1 = inlined_call_operand.vmem [shape: s32[16], index: 1, kind: output, shape index: {}]
  $region1: #{eq.8} parent=0
    #allocation0 [shape = 'u8[4096]{0}', space=vmem, size = 0x1000, scoped, tag = 'scoped mem for output reshape']
    #allocation1 [shape = 'u8[4096]{0}', space=vmem, size = 0x1000, scoped, tag = 'scoped mem for input reshape']
    %s3 = sshllo.u32 0, 2
    %v4 = vld [vmem:[%s0] sm:%s3]
    %5 = vst [vmem:[#allocation1] sm:%s3] %v4
    %v6 = vld [vmem:[#allocation1] sm:$0x1]
    %vm7 = vcmask 64512
    %8 = vst.msk [vmem:[#allocation0] sm:$0x1] %vm7, %v6
    %s9 = scalar_lea.vmem [#allocation1], 1
    %v10 = vld [vmem:[%s9] sm:$0x1]
    %11 = vrot.lane.b32.xlu0 %v10, 8
    %v12 = vpop.permute.xlu0 %11
    %vm13 = vcmask 130112
    %14 = vst.msk [vmem:[#allocation0] sm:$0x1] %vm13, %v12
    %s16 = sshllo.u32 0, 1
    %v18 = vld [vmem:[#allocation0] sm:%s16]
    %s19 = sshllo.u32 0, 1
    %20 = vst [vmem:[%s1] sm:%s19] %v18

// kernel: transformer_encoder_block.1
$region0: #{transformer_encoder_block.1}
  #allocation0 [shape = 'u32[]', space=smem, size = 0x4, offset = 0x4, fixed_abs, tag = 'smem constant byte address 0x4 - core index']
  #allocation1 [shape = 'u32[144,128]{1,0:T(1,128)}', space=vmem, size = 0x12000, scoped, tag = 'internal scratch']
  %s0 = inlined_call_operand.vmem [shape: f32[16,32], index: 0, kind: input, shape index: {}]
  %s1 = inlined_call_operand.vmem [shape: f32[96,32], index: 1, kind: input, shape index: {}]
  %s2 = inlined_call_operand.vmem [shape: f32[32,32], index: 2, kind: input, shape index: {}]
  %s3 = inlined_call_operand.vmem [shape: f32[32,64], index: 3, kind: input, shape index: {}]
  %s4 = inlined_call_operand.vmem [shape: f32[64,32], index: 4, kind: input, shape index: {}]
  %s5 = inlined_call_operand.vmem [shape: f32[16,16], index: 5, kind: input, shape index: {}]
  %s6 = inlined_call_operand.vmem [shape: f32[6,128], index: 6, kind: input, shape index: {}]
  %s7 = inlined_call_operand.hbm [shape: f32[16,32], index: 7, kind: output, shape index: {}]
  %s8 = sld [smem:[#allocation0]]
  $region38: #{transformer_encoder_block.1} parent=0
    _
  %s10 = ssub.s32 1, %s8
  %s11 = scalar_select 0, %s10, %s8
  $region1: #{transformer_encoder_block.1} parent=0
    #allocation2 [shape = 'u8[8192]{0}', space=vmem, size = 0x2000, scoped, tag = 'output window, operand 0, single buffered']
    #allocation3 [shape = 's32[1]{0}', space=sflag, size = 0x4, scoped, tag = 'scoped memory for transformer_encoder_block.1']
    %12 = vsyncpa [#allocation3], 0
    // Predicated region
    $region2: #{transformer_encoder_block.1} parent=1 // pred_check
      _
    $region3: #{transformer_encoder_block.1} parent=1 // pred_check_branch
      %14 = sbr.rel (0) target = $region5
    $region4: #{transformer_encoder_block.1} parent=1 // pred_region
      _
    $region5: #{transformer_encoder_block.1} parent=1 // pred_fallthru
      _
    // Predicated region
    $region6: #{transformer_encoder_block.1} parent=1 // pred_check
      _
    $region7: #{transformer_encoder_block.1} parent=1 // pred_check_branch
      %16 = sbr.rel (0) target = $region9
    $region8: #{transformer_encoder_block.1} parent=1 // pred_region
      _
    $region9: #{transformer_encoder_block.1} parent=1 // pred_fallthru
      _
    // Predicated region
    $region10: #{transformer_encoder_block.1} parent=1 // pred_check
      _
    $region11: #{transformer_encoder_block.1} parent=1 // pred_check_branch
      %18 = sbr.rel (0) target = $region13
    $region12: #{transformer_encoder_block.1} parent=1 // pred_region
      _
    $region13: #{transformer_encoder_block.1} parent=1 // pred_fallthru
      _
    // Predicated region
    $region14: #{transformer_encoder_block.1} parent=1 // pred_check
      _
    $region15: #{transformer_encoder_block.1} parent=1 // pred_check_branch
      %20 = sbr.rel (0) target = $region17
    $region16: #{transformer_encoder_block.1} parent=1 // pred_region
      _
    $region17: #{transformer_encoder_block.1} parent=1 // pred_fallthru
      _
    // Predicated region
    $region18: #{transformer_encoder_block.1} parent=1 // pred_check
      _
    $region19: #{transformer_encoder_block.1} parent=1 // pred_check_branch
      %22 = sbr.rel (0) target = $region21
    $region20: #{transformer_encoder_block.1} parent=1 // pred_region
      _
    $region21: #{transformer_encoder_block.1} parent=1 // pred_fallthru
      _
    // Predicated region
    $region22: #{transformer_encoder_block.1} parent=1 // pred_check
      _
    $region23: #{transformer_encoder_block.1} parent=1 // pred_check_branch
      %24 = sbr.rel (0) target = $region25
    $region24: #{transformer_encoder_block.1} parent=1 // pred_region
      _
    $region25: #{transformer_encoder_block.1} parent=1 // pred_fallthru
      _
    // Predicated region
    $region26: #{transformer_encoder_block.1} parent=1 // pred_check
      _
    $region27: #{transformer_encoder_block.1} parent=1 // pred_check_branch
      %26 = sbr.rel (0) target = $region29
    $region28: #{transformer_encoder_block.1} parent=1 // pred_region
      _
    $region29: #{transformer_encoder_block.1} parent=1 // pred_fallthru
      _
    %v27 = vld [vmem:[%s0] sm:$0xff]
    %v28 = vld [vmem:[%s0 + $0x8] sm:$0xff]
    %v29 = vld [vmem:[%s5] sm:$0xff]
    %v30 = vld [vmem:[%s5 + $0x8] sm:$0xff]
    %v31 = vld [vmem:[%s1] sm:$0xff]
    %v32 = vld [vmem:[%s1 + $0x8] sm:$0xff]
    %v33 = vld [vmem:[%s1 + $0x10] sm:$0xff]
    %v34 = vld [vmem:[%s1 + $0x18] sm:$0xff]
    %v35 = vld [vmem:[%s1 + $0x20] sm:$0xff]
    %v36 = vld [vmem:[%s1 + $0x28] sm:$0xff]
    %v37 = vld [vmem:[%s1 + $0x30] sm:$0xff]
    %v38 = vld [vmem:[%s1 + $0x38] sm:$0xff]
    %v39 = vld [vmem:[%s1 + $0x40] sm:$0xff]
    %v40 = vld [vmem:[%s1 + $0x48] sm:$0xff]
    %v41 = vld [vmem:[%s1 + $0x50] sm:$0xff]
    %v42 = vld [vmem:[%s1 + $0x58] sm:$0xff]
    %vm43 = vcmask 261120
    %v45 = vsel %vm43, %v31, 0
    %v48 = vsel %vm43, %v32, 0
    %v51 = vsel %vm43, %v33, 0
    %v54 = vsel %vm43, %v34, 0
    %v57 = vsel %vm43, %v35, 0
    %v60 = vsel %vm43, %v36, 0
    %v63 = vsel %vm43, %v37, 0
    %v66 = vsel %vm43, %v38, 0
    %v69 = vsel %vm43, %v39, 0
    %v72 = vsel %vm43, %v40, 0
    %v75 = vsel %vm43, %v41, 0
    %v78 = vsel %vm43, %v42, 0
    %v81 = vsel %vm43, %v27, 0
    %v84 = vsel %vm43, %v28, 0
    %86 = vmatprep.subr.mxu0 0.0
    %87 = vmatpush1.xpose.msra.mxu0 %v81
    %88 = vmatprep.subr.mxu0 0.0
    %89 = vmatpush1.xpose.msra.mxu0 %v84
    %90 = vmatprep.subr.mxu0 0.0
    %91 = vmatpush1.xpose.msra.mxu0 0.0
    %92 = vmatprep.subr.mxu0 0.0
    %93 = vmatpush1.xpose.msra.mxu0 0.0
    %94 = vmatprep.subr.mxu0 0.0
    %95 = vmatpush1.xpose.msra.mxu0 0.0
    %96 = vmatprep.subr.mxu0 0.0
    %97 = vmatpush1.xpose.msra.mxu0 0.0
    %98 = vmatprep.subr.mxu0 0.0
    %99 = vmatpush1.xpose.msra.mxu0 0.0
    %100 = vmatprep.subr.mxu0 0.0
    %101 = vmatpush1.xpose.msra.mxu0 0.0
    %102 = vmatprep.subr.mxu0 0.0
    %103 = vmatpush1.xpose.msra.mxu0 0.0
    %104 = vmatprep.subr.mxu0 0.0
    %105 = vmatpush1.xpose.msra.mxu0 0.0
    %106 = vmatprep.subr.mxu0 0.0
    %107 = vmatpush1.xpose.msra.mxu0 0.0
    %108 = vmatprep.subr.mxu0 0.0
    %109 = vmatpush1.xpose.msra.mxu0 0.0
    %110 = vmatprep.subr.mxu0 0.0
    %111 = vmatpush1.xpose.msra.mxu0 0.0
    %112 = vmatprep.subr.mxu0 0.0
    %113 = vmatpush1.xpose.msra.mxu0 0.0
    %114 = vmatprep.subr.mxu0 0.0
    %115 = vmatpush1.xpose.msra.mxu0 0.0
    %116 = vmatprep.subr.mxu0 0.0
    %117 = vmatpush1.xpose.msra.mxu0 0.0
    %118 = vmatprep.subr.mxu0 0.0
    %119 = vmatpush1.xpose.msra.mxu0 0.0
    %120 = vmatprep.subr.mxu0 0.0
    %121 = vmatpush1.xpose.msra.mxu0 0.0
    %122 = vmatprep.subr.mxu0 0.0
    %123 = vmatpush1.xpose.msra.mxu0 0.0
    %124 = vmatprep.subr.mxu0 0.0
    %125 = vmatpush1.xpose.msra.mxu0 0.0
    %126 = vmatprep.subr.mxu0 0.0
    %127 = vmatpush1.xpose.msra.mxu0 0.0
    %128 = vmatprep.subr.mxu0 0.0
    %129 = vmatpush1.xpose.msra.mxu0 0.0
    %130 = vmatprep.subr.mxu0 0.0
    %131 = vmatpush1.xpose.msra.mxu0 0.0
    %132 = vmatprep.subr.mxu0 0.0
    %133 = vmatpush1.xpose.msra.mxu0 0.0
    %134 = vmatprep.subr.mxu0 0.0
    %135 = vmatpush1.xpose.msra.mxu0 0.0
    %136 = vmatprep.subr.mxu0 0.0
    %137 = vmatpush1.xpose.msra.mxu0 0.0
    %138 = vmatprep.subr.mxu0 0.0
    %139 = vmatpush1.xpose.msra.mxu0 0.0
    %140 = vmatprep.subr.mxu0 0.0
    %141 = vmatpush1.xpose.msra.mxu0 0.0
    %142 = vmatprep.subr.mxu0 0.0
    %143 = vmatpush1.xpose.msra.mxu0 0.0
    %144 = vmatprep.subr.mxu0 0.0
    %145 = vmatpush1.xpose.msra.mxu0 0.0
    %146 = vmatprep.subr.mxu0 0.0
    %147 = vmatpush1.xpose.msra.mxu0 0.0
    %148 = vmatprep.subr.mxu0 0.0
    %149 = vmatpush1.xpose.msra.mxu0 0.0
    %150 = vmatprep.mubr.f32.mxu0 0.0
    %151 = vmatmul.mubr.f32.gmra.mrb[0].mxu0 %v45
    %v152 = vpop.f32.mrb[0].mxu0
    %v153 = vadd.f32 0.0, %v152
    %v154 = vpop.f32.mrb[0].mxu0
    %155 = vmatprep.mubr.f32.mxu0 0.0
    %156 = vmatmul.mubr.f32.gmra.mrb[0].mxu0 %v48
    %v157 = vpop.f32.mrb[0].mxu0
    %v158 = vadd.f32 0.0, %v157
    %v159 = vpop.f32.mrb[0].mxu0
    %160 = vmatprep.mubr.f32.mxu0 0.0
    %161 = vmatmul.mubr.f32.gmra.mrb[0].mxu0 %v51
    %v162 = vpop.f32.mrb[0].mxu0
    %v163 = vadd.f32 0.0, %v162
    %v164 = vpop.f32.mrb[0].mxu0
    %165 = vmatprep.mubr.f32.mxu0 0.0
    %166 = vmatmul.mubr.f32.gmra.mrb[0].mxu0 %v54
    %v167 = vpop.f32.mrb[0].mxu0
    %v168 = vadd.f32 0.0, %v167
    %v169 = vpop.f32.mrb[0].mxu0
    %170 = vmatprep.mubr.f32.mxu0 0.0
    %171 = vmatmul.mubr.f32.gmra.mrb[0].mxu0 %v57
    %v172 = vpop.f32.mrb[0].mxu0
    %v173 = vadd.f32 0.0, %v172
    %v174 = vpop.f32.mrb[0].mxu0
    %175 = vmatprep.mubr.f32.mxu0 0.0
    %176 = vmatmul.mubr.f32.gmra.mrb[0].mxu0 %v60
    %v177 = vpop.f32.mrb[0].mxu0
    %v178 = vadd.f32 0.0, %v177
    %v179 = vpop.f32.mrb[0].mxu0
    %180 = vmatprep.mubr.f32.mxu0 0.0
    %181 = vmatmul.mubr.f32.gmra.mrb[0].mxu0 %v63
    %v182 = vpop.f32.mrb[0].mxu0
    %v183 = vadd.f32 0.0, %v182
    %v184 = vpop.f32.mrb[0].mxu0
    %185 = vmatprep.mubr.f32.mxu0 0.0
    %186 = vmatmul.mubr.f32.gmra.mrb[0].mxu0 %v66
    %v187 = vpop.f32.mrb[0].mxu0
    %v188 = vadd.f32 0.0, %v187
    %v189 = vpop.f32.mrb[0].mxu0
    %190 = vmatprep.mubr.f32.mxu0 0.0
    %191 = vmatmul.mubr.f32.gmra.mrb[0].mxu0 %v69
    %v192 = vpop.f32.mrb[0].mxu0
    %v193 = vadd.f32 0.0, %v192
    %v194 = vpop.f32.mrb[0].mxu0
    %195 = vmatprep.mubr.f32.mxu0 0.0
    %196 = vmatmul.mubr.f32.gmra.mrb[0].mxu0 %v72
    %v197 = vpop.f32.mrb[0].mxu0
    %v198 = vadd.f32 0.0, %v197
    %v199 = vpop.f32.mrb[0].mxu0
    %200 = vmatprep.mubr.f32.mxu0 0.0
    %201 = vmatmul.mubr.f32.gmra.mrb[0].mxu0 %v75
    %v202 = vpop.f32.mrb[0].mxu0
    %v203 = vadd.f32 0.0, %v202
    %v204 = vpop.f32.mrb[0].mxu0
    %205 = vmatprep.mubr.f32.mxu0 0.0
    %206 = vmatmul.mubr.f32.gmra.mrb[0].mxu0 %v78
    %v207 = vpop.f32.mrb[0].mxu0
    %v208 = vadd.f32 0.0, %v207
    %v209 = vpop.f32.mrb[0].mxu0
    %210 = vdwg.mxu0
    %211 = vxpose.xlu0.b32.start [1/16] %v153, 128
    %212 = vxpose.xlu0.b32.cont [2/16] 0.0, 128
    %213 = vxpose.xlu0.b32.cont [3/16] 0.0, 128
    %214 = vxpose.xlu0.b32.cont [4/16] 0.0, 128
    %215 = vxpose.xlu0.b32.cont [5/16] 0.0, 128
    %216 = vxpose.xlu0.b32.cont [6/16] 0.0, 128
    %217 = vxpose.xlu0.b32.cont [7/16] 0.0, 128
    %218 = vxpose.xlu0.b32.cont [8/16] 0.0, 128
    %219 = vxpose.xlu0.b32.cont [9/16] 0.0, 128
    %220 = vxpose.xlu0.b32.cont [10/16] 0.0, 128
    %221 = vxpose.xlu0.b32.cont [11/16] 0.0, 128
    %222 = vxpose.xlu0.b32.cont [12/16] 0.0, 128
    %223 = vxpose.xlu0.b32.cont [13/16] 0.0, 128
    %224 = vxpose.xlu0.b32.cont [14/16] 0.0, 128
    %225 = vxpose.xlu0.b32.cont [15/16] 0.0, 128
    %226 = vxpose.xlu0.b32.end [16/16] 0.0, 128
    %v227 = vpop.trf.xlu0
    %v228 = vpop.trf.xlu0
    %v229 = vpop.trf.xlu0
    %v230 = vpop.trf.xlu0
    %v231 = vpop.trf.xlu0
    %v232 = vpop.trf.xlu0
    %v233 = vpop.trf.xlu0
    %v234 = vpop.trf.xlu0
    %v235 = vpop.trf.xlu0
    %v236 = vpop.trf.xlu0
    %v237 = vpop.trf.xlu0
    %v238 = vpop.trf.xlu0
    %v239 = vpop.trf.xlu0
    %v240 = vpop.trf.xlu0
    %v241 = vpop.trf.xlu0
    %v242 = vpop.trf.xlu0
    %vm243 = vcmask 64512
    %v245 = vsel %vm243, %v227, 0
    %v248 = vsel %vm243, %v228, 0
    %250 = vmatprep.subr.mxu0 0.0
    %251 = vmatpush1.msra.mxu0 %v173
    %252 = vmatprep.subr.mxu0 0.0
    %253 = vmatpush1.msra.mxu0 0.0
    %254 = vmatprep.subr.mxu0 0.0
    %255 = vmatpush1.msra.mxu0 0.0
    %256 = vmatprep.subr.mxu0 0.0
    %257 = vmatpush1.msra.mxu0 0.0
    %258 = vmatprep.subr.mxu0 0.0
    %259 = vmatpush1.msra.mxu0 0.0
    %260 = vmatprep.subr.mxu0 0.0
    %261 = vmatpush1.msra.mxu0 0.0
    %262 = vmatprep.subr.mxu0 0.0
    %263 = vmatpush1.msra.mxu0 0.0
    %264 = vmatprep.subr.mxu0 0.0
    %265 = vmatpush1.msra.mxu0 0.0
    %266 = vmatprep.subr.mxu0 0.0
    %267 = vmatpush1.msra.mxu0 0.0
    %268 = vmatprep.subr.mxu0 0.0
    %269 = vmatpush1.msra.mxu0 0.0
    %270 = vmatprep.subr.mxu0 0.0
    %271 = vmatpush1.msra.mxu0 0.0
    %272 = vmatprep.subr.mxu0 0.0
    %273 = vmatpush1.msra.mxu0 0.0
    %274 = vmatprep.subr.mxu0 0.0
    %275 = vmatpush1.msra.mxu0 0.0
    %276 = vmatprep.subr.mxu0 0.0
    %277 = vmatpush1.msra.mxu0 0.0
    %278 = vmatprep.subr.mxu0 0.0
    %279 = vmatpush1.msra.mxu0 0.0
    %280 = vmatprep.subr.mxu0 0.0
    %281 = vmatpush1.msra.mxu0 0.0
    %282 = vmatprep.subr.mxu0 0.0
    %283 = vmatpush1.msra.mxu0 0.0
    %284 = vmatprep.subr.mxu0 0.0
    %285 = vmatpush1.msra.mxu0 0.0
    %286 = vmatprep.subr.mxu0 0.0
    %287 = vmatpush1.msra.mxu0 0.0
    %288 = vmatprep.subr.mxu0 0.0
    %289 = vmatpush1.msra.mxu0 0.0
    %290 = vmatprep.subr.mxu0 0.0
    %291 = vmatpush1.msra.mxu0 0.0
    %292 = vmatprep.subr.mxu0 0.0
    %293 = vmatpush1.msra.mxu0 0.0
    %294 = vmatprep.subr.mxu0 0.0
    %295 = vmatpush1.msra.mxu0 0.0
    %296 = vmatprep.subr.mxu0 0.0
    %297 = vmatpush1.msra.mxu0 0.0
    %298 = vmatprep.subr.mxu0 0.0
    %299 = vmatpush1.msra.mxu0 0.0
    %300 = vmatprep.subr.mxu0 0.0
    %301 = vmatpush1.msra.mxu0 0.0
    %302 = vmatprep.subr.mxu0 0.0
    %303 = vmatpush1.msra.mxu0 0.0
    %304 = vmatprep.subr.mxu0 0.0
    %305 = vmatpush1.msra.mxu0 0.0
    %306 = vmatprep.subr.mxu0 0.0
    %307 = vmatpush1.msra.mxu0 0.0
    %308 = vmatprep.subr.mxu0 0.0
    %309 = vmatpush1.msra.mxu0 0.0
    %310 = vmatprep.subr.mxu0 0.0
    %311 = vmatpush1.msra.mxu0 0.0
    %312 = vmatprep.subr.mxu0 0.0
    %313 = vmatpush1.msra.mxu0 0.0
    %314 = vmatprep.mubr.f32.mxu0 0.0
    %315 = vmatmul.mubr.f32.gmra.mrb[0].mxu0 %v245
    %v316 = vpop.f32.mrb[0].mxu0
    %v317 = vadd.f32 %v29, %v316
    %v318 = vpop.f32.mrb[0].mxu0
    %319 = vmatprep.mubr.f32.mxu0 0.0
    %320 = vmatmul.mubr.f32.gmra.mrb[0].mxu0 %v248
    %v321 = vpop.f32.mrb[0].mxu0
    %v322 = vadd.f32 %v30, %v321
    %v323 = vpop.f32.mrb[0].mxu0
    %324 = vdwg.mxu0
    %vm325 = vcmask 130048
    %v326 = vsel %vm325, %v317, -inf
    %327 = vmax.xlane.f32.xlu0 %v326
    %v328 = vpop.xlane.xlu0 %327
    %v329 = vsel %vm325, %v322, -inf
    %330 = vmax.xlane.f32.xlu0 %v329
    %v331 = vpop.xlane.xlu0 %330
    %v332 = vsub.f32 %v317, %v328
    %v333 = vsub.f32 %v322, %v331
    %v334 = vmul.f32 %v332, 1.442695
    %v335 = vpow.pop %v334
    %v336 = vmul.f32 %v333, 1.442695
    %v337 = vpow.pop %v336
    %v338 = vsel %vm325, %v335, 0.0
    %339 = vadd.xlane.f32.xlu0 %v338
    %v340 = vpop.xlane.xlu0 %339
    %v341 = vsel %vm325, %v337, 0.0
    %342 = vadd.xlane.f32.xlu0 %v341
    %v343 = vpop.xlane.xlu0 %342
    %v344 = vrcp.pop %v340
    %v345 = vmul.f32 %v335, %v344
    %v346 = vrcp.pop %v343
    %v347 = vmul.f32 %v337, %v346
    %v349 = vsel %vm325, %v193, 0
    %v352 = vsel %vm325, %v345, 0
    %v355 = vsel %vm325, %v347, 0
    %357 = vmatprep.subr.mxu0 0.0
    %358 = vmatpush1.xpose.msra.mxu0 %v352
    %359 = vmatprep.subr.mxu0 0.0
    %360 = vmatpush1.xpose.msra.mxu0 %v355
    %361 = vmatprep.subr.mxu0 0.0
    %362 = vmatpush1.xpose.msra.mxu0 0.0
    %363 = vmatprep.subr.mxu0 0.0
    %364 = vmatpush1.xpose.msra.mxu0 0.0
    %365 = vmatprep.subr.mxu0 0.0
    %366 = vmatpush1.xpose.msra.mxu0 0.0
    %367 = vmatprep.subr.mxu0 0.0
    %368 = vmatpush1.xpose.msra.mxu0 0.0
    %369 = vmatprep.subr.mxu0 0.0
    %370 = vmatpush1.xpose.msra.mxu0 0.0
    %371 = vmatprep.subr.mxu0 0.0
    %372 = vmatpush1.xpose.msra.mxu0 0.0
    %373 = vmatprep.subr.mxu0 0.0
    %374 = vmatpush1.xpose.msra.mxu0 0.0
    %375 = vmatprep.subr.mxu0 0.0
    %376 = vmatpush1.xpose.msra.mxu0 0.0
    %377 = vmatprep.subr.mxu0 0.0
    %378 = vmatpush1.xpose.msra.mxu0 0.0
    %379 = vmatprep.subr.mxu0 0.0
    %380 = vmatpush1.xpose.msra.mxu0 0.0
    %381 = vmatprep.subr.mxu0 0.0
    %382 = vmatpush1.xpose.msra.mxu0 0.0
    %383 = vmatprep.subr.mxu0 0.0
    %384 = vmatpush1.xpose.msra.mxu0 0.0
    %385 = vmatprep.subr.mxu0 0.0
    %386 = vmatpush1.xpose.msra.mxu0 0.0
    %387 = vmatprep.subr.mxu0 0.0
    %388 = vmatpush1.xpose.msra.mxu0 0.0
    %389 = vmatprep.subr.mxu0 0.0
    %390 = vmatpush1.xpose.msra.mxu0 0.0
    %391 = vmatprep.subr.mxu0 0.0
    %392 = vmatpush1.xpose.msra.mxu0 0.0
    %393 = vmatprep.subr.mxu0 0.0
    %394 = vmatpush1.xpose.msra.mxu0 0.0
    %395 = vmatprep.subr.mxu0 0.0
    %396 = vmatpush1.xpose.msra.mxu0 0.0
    %397 = vmatprep.subr.mxu0 0.0
    %398 = vmatpush1.xpose.msra.mxu0 0.0
    %399 = vmatprep.subr.mxu0 0.0
    %400 = vmatpush1.xpose.msra.mxu0 0.0
    %401 = vmatprep.subr.mxu0 0.0
    %402 = vmatpush1.xpose.msra.mxu0 0.0
    %403 = vmatprep.subr.mxu0 0.0
    %404 = vmatpush1.xpose.msra.mxu0 0.0
    %405 = vmatprep.subr.mxu0 0.0
    %406 = vmatpush1.xpose.msra.mxu0 0.0
    %407 = vmatprep.subr.mxu0 0.0
    %408 = vmatpush1.xpose.msra.mxu0 0.0
    %409 = vmatprep.subr.mxu0 0.0
    %410 = vmatpush1.xpose.msra.mxu0 0.0
    %411 = vmatprep.subr.mxu0 0.0
    %412 = vmatpush1.xpose.msra.mxu0 0.0
    %413 = vmatprep.subr.mxu0 0.0
    %414 = vmatpush1.xpose.msra.mxu0 0.0
    %415 = vmatprep.subr.mxu0 0.0
    %416 = vmatpush1.xpose.msra.mxu0 0.0
    %417 = vmatprep.subr.mxu0 0.0
    %418 = vmatpush1.xpose.msra.mxu0 0.0
    %419 = vmatprep.subr.mxu0 0.0
    %420 = vmatpush1.xpose.msra.mxu0 0.0
    %421 = vmatprep.mubr.f32.mxu0 0.0
    %422 = vmatmul.mubr.f32.gmra.mrb[0].mxu0 %v349
    %v423 = vpop.f32.mrb[0].mxu0
    %v424 = vadd.f32 0.0, %v423
    %v425 = vpop.f32.mrb[0].mxu0
    %426 = vdwg.mxu0
    %427 = vxpose.xlu0.b32.start [1/16] %v158, 128
    %428 = vxpose.xlu0.b32.cont [2/16] 0.0, 128
    %429 = vxpose.xlu0.b32.cont [3/16] 0.0, 128
    %430 = vxpose.xlu0.b32.cont [4/16] 0.0, 128
    %431 = vxpose.xlu0.b32.cont [5/16] 0.0, 128
    %432 = vxpose.xlu0.b32.cont [6/16] 0.0, 128
    %433 = vxpose.xlu0.b32.cont [7/16] 0.0, 128
    %434 = vxpose.xlu0.b32.cont [8/16] 0.0, 128
    %435 = vxpose.xlu0.b32.cont [9/16] 0.0, 128
    %436 = vxpose.xlu0.b32.cont [10/16] 0.0, 128
    %437 = vxpose.xlu0.b32.cont [11/16] 0.0, 128
    %438 = vxpose.xlu0.b32.cont [12/16] 0.0, 128
    %439 = vxpose.xlu0.b32.cont [13/16] 0.0, 128
    %440 = vxpose.xlu0.b32.cont [14/16] 0.0, 128
    %441 = vxpose.xlu0.b32.cont [15/16] 0.0, 128
    %442 = vxpose.xlu0.b32.end [16/16] 0.0, 128
    %v443 = vpop.trf.xlu0
    %v444 = vpop.trf.xlu0
    %v445 = vpop.trf.xlu0
    %v446 = vpop.trf.xlu0
    %v447 = vpop.trf.xlu0
    %v448 = vpop.trf.xlu0
    %v449 = vpop.trf.xlu0
    %v450 = vpop.trf.xlu0
    %v451 = vpop.trf.xlu0
    %v452 = vpop.trf.xlu0
    %v453 = vpop.trf.xlu0
    %v454 = vpop.trf.xlu0
    %v455 = vpop.trf.xlu0
    %v456 = vpop.trf.xlu0
    %v457 = vpop.trf.xlu0
    %v458 = vpop.trf.xlu0
    %v460 = vsel %vm243, %v443, 0
    %v463 = vsel %vm243, %v444, 0
    %465 = vmatprep.subr.mxu0 0.0
    %466 = vmatpush1.msra.mxu0 %v178
    %467 = vmatprep.subr.mxu0 0.0
    %468 = vmatpush1.msra.mxu0 0.0
    %469 = vmatprep.subr.mxu0 0.0
    %470 = vmatpush1.msra.mxu0 0.0
    %471 = vmatprep.subr.mxu0 0.0
    %472 = vmatpush1.msra.mxu0 0.0
    %473 = vmatprep.subr.mxu0 0.0
    %474 = vmatpush1.msra.mxu0 0.0
    %475 = vmatprep.subr.mxu0 0.0
    %476 = vmatpush1.msra.mxu0 0.0
    %477 = vmatprep.subr.mxu0 0.0
    %478 = vmatpush1.msra.mxu0 0.0
    %479 = vmatprep.subr.mxu0 0.0
    %480 = vmatpush1.msra.mxu0 0.0
    %481 = vmatprep.subr.mxu0 0.0
    %482 = vmatpush1.msra.mxu0 0.0
    %483 = vmatprep.subr.mxu0 0.0
    %484 = vmatpush1.msra.mxu0 0.0
    %485 = vmatprep.subr.mxu0 0.0
    %486 = vmatpush1.msra.mxu0 0.0
    %487 = vmatprep.subr.mxu0 0.0
    %488 = vmatpush1.msra.mxu0 0.0
    %489 = vmatprep.subr.mxu0 0.0
    %490 = vmatpush1.msra.mxu0 0.0
    %491 = vmatprep.subr.mxu0 0.0
    %492 = vmatpush1.msra.mxu0 0.0
    %493 = vmatprep.subr.mxu0 0.0
    %494 = vmatpush1.msra.mxu0 0.0
    %495 = vmatprep.subr.mxu0 0.0
    %496 = vmatpush1.msra.mxu0 0.0
    %497 = vmatprep.subr.mxu0 0.0
    %498 = vmatpush1.msra.mxu0 0.0
    %499 = vmatprep.subr.mxu0 0.0
    %500 = vmatpush1.msra.mxu0 0.0
    %501 = vmatprep.subr.mxu0 0.0
    %502 = vmatpush1.msra.mxu0 0.0
    %503 = vmatprep.subr.mxu0 0.0
    %504 = vmatpush1.msra.mxu0 0.0
    %505 = vmatprep.subr.mxu0 0.0
    %506 = vmatpush1.msra.mxu0 0.0
    %507 = vmatprep.subr.mxu0 0.0
    %508 = vmatpush1.msra.mxu0 0.0
    %509 = vmatprep.subr.mxu0 0.0
    %510 = vmatpush1.msra.mxu0 0.0
    %511 = vmatprep.subr.mxu0 0.0
    %512 = vmatpush1.msra.mxu0 0.0
    %513 = vmatprep.subr.mxu0 0.0
    %514 = vmatpush1.msra.mxu0 0.0
    %515 = vmatprep.subr.mxu0 0.0
    %516 = vmatpush1.msra.mxu0 0.0
    %517 = vmatprep.subr.mxu0 0.0
    %518 = vmatpush1.msra.mxu0 0.0
    %519 = vmatprep.subr.mxu0 0.0
    %520 = vmatpush1.msra.mxu0 0.0
    %521 = vmatprep.subr.mxu0 0.0
    %522 = vmatpush1.msra.mxu0 0.0
    %523 = vmatprep.subr.mxu0 0.0
    %524 = vmatpush1.msra.mxu0 0.0
    %525 = vmatprep.subr.mxu0 0.0
    %526 = vmatpush1.msra.mxu0 0.0
    %527 = vmatprep.subr.mxu0 0.0
    %528 = vmatpush1.msra.mxu0 0.0
    %529 = vmatprep.mubr.f32.mxu0 0.0
    %530 = vmatmul.mubr.f32.gmra.mrb[0].mxu0 %v460
    %v531 = vpop.f32.mrb[0].mxu0
    %v532 = vadd.f32 %v29, %v531
    %v533 = vpop.f32.mrb[0].mxu0
    %534 = vmatprep.mubr.f32.mxu0 0.0
    %535 = vmatmul.mubr.f32.gmra.mrb[0].mxu0 %v463
    %v536 = vpop.f32.mrb[0].mxu0
    %v537 = vadd.f32 %v30, %v536
    %v538 = vpop.f32.mrb[0].mxu0
    %539 = vdwg.mxu0
    %v540 = vsel %vm325, %v532, -inf
    %541 = vmax.xlane.f32.xlu0 %v540
    %v542 = vpop.xlane.xlu0 %541
    %v543 = vsel %vm325, %v537, -inf
    %544 = vmax.xlane.f32.xlu0 %v543
    %v545 = vpop.xlane.xlu0 %544
    %v546 = vsub.f32 %v532, %v542
    %v547 = vsub.f32 %v537, %v545
    %v548 = vmul.f32 %v546, 1.442695
    %v549 = vpow.pop %v548
    %v550 = vmul.f32 %v547, 1.442695
    %v551 = vpow.pop %v550
    %v552 = vsel %vm325, %v549, 0.0
    %553 = vadd.xlane.f32.xlu0 %v552
    %v554 = vpop.xlane.xlu0 %553
    %v555 = vsel %vm325, %v551, 0.0
    %556 = vadd.xlane.f32.xlu0 %v555
    %v557 = vpop.xlane.xlu0 %556
    %v558 = vrcp.pop %v554
    %v559 = vmul.f32 %v549, %v558
    %v560 = vrcp.pop %v557
    %v561 = vmul.f32 %v551, %v560
    %v563 = vsel %vm325, %v198, 0
    %v566 = vsel %vm325, %v559, 0
    %v569 = vsel %vm325, %v561, 0
    %571 = vmatprep.subr.mxu0 0.0
    %572 = vmatpush1.xpose.msra.mxu0 %v566
    %573 = vmatprep.subr.mxu0 0.0
    %574 = vmatpush1.xpose.msra.mxu0 %v569
    %575 = vmatprep.subr.mxu0 0.0
    %576 = vmatpush1.xpose.msra.mxu0 0.0
    %577 = vmatprep.subr.mxu0 0.0
    %578 = vmatpush1.xpose.msra.mxu0 0.0
    %579 = vmatprep.subr.mxu0 0.0
    %580 = vmatpush1.xpose.msra.mxu0 0.0
    %581 = vmatprep.subr.mxu0 0.0
    %582 = vmatpush1.xpose.msra.mxu0 0.0
    %583 = vmatprep.subr.mxu0 0.0
    %584 = vmatpush1.xpose.msra.mxu0 0.0
    %585 = vmatprep.subr.mxu0 0.0
    %586 = vmatpush1.xpose.msra.mxu0 0.0
    %587 = vmatprep.subr.mxu0 0.0
    %588 = vmatpush1.xpose.msra.mxu0 0.0
    %589 = vmatprep.subr.mxu0 0.0
    %590 = vmatpush1.xpose.msra.mxu0 0.0
    %591 = vmatprep.subr.mxu0 0.0
    %592 = vmatpush1.xpose.msra.mxu0 0.0
    %593 = vmatprep.subr.mxu0 0.0
    %594 = vmatpush1.xpose.msra.mxu0 0.0
    %595 = vmatprep.subr.mxu0 0.0
    %596 = vmatpush1.xpose.msra.mxu0 0.0
    %597 = vmatprep.subr.mxu0 0.0
    %598 = vmatpush1.xpose.msra.mxu0 0.0
    %599 = vmatprep.subr.mxu0 0.0
    %600 = vmatpush1.xpose.msra.mxu0 0.0
    %601 = vmatprep.subr.mxu0 0.0
    %602 = vmatpush1.xpose.msra.mxu0 0.0
    %603 = vmatprep.subr.mxu0 0.0
    %604 = vmatpush1.xpose.msra.mxu0 0.0
    %605 = vmatprep.subr.mxu0 0.0
    %606 = vmatpush1.xpose.msra.mxu0 0.0
    %607 = vmatprep.subr.mxu0 0.0
    %608 = vmatpush1.xpose.msra.mxu0 0.0
    %609 = vmatprep.subr.mxu0 0.0
    %610 = vmatpush1.xpose.msra.mxu0 0.0
    %611 = vmatprep.subr.mxu0 0.0
    %612 = vmatpush1.xpose.msra.mxu0 0.0
    %613 = vmatprep.subr.mxu0 0.0
    %614 = vmatpush1.xpose.msra.mxu0 0.0
    %615 = vmatprep.subr.mxu0 0.0
    %616 = vmatpush1.xpose.msra.mxu0 0.0
    %617 = vmatprep.subr.mxu0 0.0
    %618 = vmatpush1.xpose.msra.mxu0 0.0
    %619 = vmatprep.subr.mxu0 0.0
    %620 = vmatpush1.xpose.msra.mxu0 0.0
    %621 = vmatprep.subr.mxu0 0.0
    %622 = vmatpush1.xpose.msra.mxu0 0.0
    %623 = vmatprep.subr.mxu0 0.0
    %624 = vmatpush1.xpose.msra.mxu0 0.0
    %625 = vmatprep.subr.mxu0 0.0
    %626 = vmatpush1.xpose.msra.mxu0 0.0
    %627 = vmatprep.subr.mxu0 0.0
    %628 = vmatpush1.xpose.msra.mxu0 0.0
    %629 = vmatprep.subr.mxu0 0.0
    %630 = vmatpush1.xpose.msra.mxu0 0.0
    %631 = vmatprep.subr.mxu0 0.0
    %632 = vmatpush1.xpose.msra.mxu0 0.0
    %633 = vmatprep.subr.mxu0 0.0
    %634 = vmatpush1.xpose.msra.mxu0 0.0
    %635 = vmatprep.mubr.f32.mxu0 0.0
    %636 = vmatmul.mubr.f32.gmra.mrb[0].mxu0 %v563
    %v637 = vpop.f32.mrb[0].mxu0
    %v638 = vadd.f32 0.0, %v637
    %v639 = vpop.f32.mrb[0].mxu0
    %640 = vdwg.mxu0
    %641 = vxpose.xlu0.b32.start [1/16] %v163, 128
    %642 = vxpose.xlu0.b32.cont [2/16] 0.0, 128
    %643 = vxpose.xlu0.b32.cont [3/16] 0.0, 128
    %644 = vxpose.xlu0.b32.cont [4/16] 0.0, 128
    %645 = vxpose.xlu0.b32.cont [5/16] 0.0, 128
    %646 = vxpose.xlu0.b32.cont [6/16] 0.0, 128
    %647 = vxpose.xlu0.b32.cont [7/16] 0.0, 128
    %648 = vxpose.xlu0.b32.cont [8/16] 0.0, 128
    %649 = vxpose.xlu0.b32.cont [9/16] 0.0, 128
    %650 = vxpose.xlu0.b32.cont [10/16] 0.0, 128
    %651 = vxpose.xlu0.b32.cont [11/16] 0.0, 128
    %652 = vxpose.xlu0.b32.cont [12/16] 0.0, 128
    %653 = vxpose.xlu0.b32.cont [13/16] 0.0, 128
    %654 = vxpose.xlu0.b32.cont [14/16] 0.0, 128
    %655 = vxpose.xlu0.b32.cont [15/16] 0.0, 128
    %656 = vxpose.xlu0.b32.end [16/16] 0.0, 128
    %v657 = vpop.trf.xlu0
    %v658 = vpop.trf.xlu0
    %v659 = vpop.trf.xlu0
    %v660 = vpop.trf.xlu0
    %v661 = vpop.trf.xlu0
    %v662 = vpop.trf.xlu0
    %v663 = vpop.trf.xlu0
    %v664 = vpop.trf.xlu0
    %v665 = vpop.trf.xlu0
    %v666 = vpop.trf.xlu0
    %v667 = vpop.trf.xlu0
    %v668 = vpop.trf.xlu0
    %v669 = vpop.trf.xlu0
    %v670 = vpop.trf.xlu0
    %v671 = vpop.trf.xlu0
    %v672 = vpop.trf.xlu0
    %v674 = vsel %vm243, %v657, 0
    %v677 = vsel %vm243, %v658, 0
    %679 = vmatprep.subr.mxu0 0.0
    %680 = vmatpush1.msra.mxu0 %v183
    %681 = vmatprep.subr.mxu0 0.0
    %682 = vmatpush1.msra.mxu0 0.0
    %683 = vmatprep.subr.mxu0 0.0
    %684 = vmatpush1.msra.mxu0 0.0
    %685 = vmatprep.subr.mxu0 0.0
    %686 = vmatpush1.msra.mxu0 0.0
    %687 = vmatprep.subr.mxu0 0.0
    %688 = vmatpush1.msra.mxu0 0.0
    %689 = vmatprep.subr.mxu0 0.0
    %690 = vmatpush1.msra.mxu0 0.0
    %691 = vmatprep.subr.mxu0 0.0
    %692 = vmatpush1.msra.mxu0 0.0
    %693 = vmatprep.subr.mxu0 0.0
    %694 = vmatpush1.msra.mxu0 0.0
    %695 = vmatprep.subr.mxu0 0.0
    %696 = vmatpush1.msra.mxu0 0.0
    %697 = vmatprep.subr.mxu0 0.0
    %698 = vmatpush1.msra.mxu0 0.0
    %699 = vmatprep.subr.mxu0 0.0
    %700 = vmatpush1.msra.mxu0 0.0
    %701 = vmatprep.subr.mxu0 0.0
    %702 = vmatpush1.msra.mxu0 0.0
    %703 = vmatprep.subr.mxu0 0.0
    %704 = vmatpush1.msra.mxu0 0.0
    %705 = vmatprep.subr.mxu0 0.0
    %706 = vmatpush1.msra.mxu0 0.0
    %707 = vmatprep.subr.mxu0 0.0
    %708 = vmatpush1.msra.mxu0 0.0
    %709 = vmatprep.subr.mxu0 0.0
    %710 = vmatpush1.msra.mxu0 0.0
    %711 = vmatprep.subr.mxu0 0.0
    %712 = vmatpush1.msra.mxu0 0.0
    %713 = vmatprep.subr.mxu0 0.0
    %714 = vmatpush1.msra.mxu0 0.0
    %715 = vmatprep.subr.mxu0 0.0
    %716 = vmatpush1.msra.mxu0 0.0
    %717 = vmatprep.subr.mxu0 0.0
    %718 = vmatpush1.msra.mxu0 0.0
    %719 = vmatprep.subr.mxu0 0.0
    %720 = vmatpush1.msra.mxu0 0.0
    %721 = vmatprep.subr.mxu0 0.0
    %722 = vmatpush1.msra.mxu0 0.0
    %723 = vmatprep.subr.mxu0 0.0
    %724 = vmatpush1.msra.mxu0 0.0
    %725 = vmatprep.subr.mxu0 0.0
    %726 = vmatpush1.msra.mxu0 0.0
    %727 = vmatprep.subr.mxu0 0.0
    %728 = vmatpush1.msra.mxu0 0.0
    %729 = vmatprep.subr.mxu0 0.0
    %730 = vmatpush1.msra.mxu0 0.0
    %731 = vmatprep.subr.mxu0 0.0
    %732 = vmatpush1.msra.mxu0 0.0
    %733 = vmatprep.subr.mxu0 0.0
    %734 = vmatpush1.msra.mxu0 0.0
    %735 = vmatprep.subr.mxu0 0.0
    %736 = vmatpush1.msra.mxu0 0.0
    %737 = vmatprep.subr.mxu0 0.0
    %738 = vmatpush1.msra.mxu0 0.0
    %739 = vmatprep.subr.mxu0 0.0
    %740 = vmatpush1.msra.mxu0 0.0
    %741 = vmatprep.subr.mxu0 0.0
    %742 = vmatpush1.msra.mxu0 0.0
    %743 = vmatprep.mubr.f32.mxu0 0.0
    %744 = vmatmul.mubr.f32.gmra.mrb[0].mxu0 %v674
    %v745 = vpop.f32.mrb[0].mxu0
    %v746 = vadd.f32 %v29, %v745
    %v747 = vpop.f32.mrb[0].mxu0
    %748 = vmatprep.mubr.f32.mxu0 0.0
    %749 = vmatmul.mubr.f32.gmra.mrb[0].mxu0 %v677
    %v750 = vpop.f32.mrb[0].mxu0
    %v751 = vadd.f32 %v30, %v750
    %v752 = vpop.f32.mrb[0].mxu0
    %753 = vdwg.mxu0
    %v754 = vsel %vm325, %v746, -inf
    %755 = vmax.xlane.f32.xlu0 %v754
    %v756 = vpop.xlane.xlu0 %755
    %v757 = vsel %vm325, %v751, -inf
    %758 = vmax.xlane.f32.xlu0 %v757
    %v759 = vpop.xlane.xlu0 %758
    %v760 = vsub.f32 %v746, %v756
    %v761 = vsub.f32 %v751, %v759
    %v762 = vmul.f32 %v760, 1.442695
    %v763 = vpow.pop %v762
    %v764 = vmul.f32 %v761, 1.442695
    %v765 = vpow.pop %v764
    %v766 = vsel %vm325, %v763, 0.0
    %767 = vadd.xlane.f32.xlu0 %v766
    %v768 = vpop.xlane.xlu0 %767
    %v769 = vsel %vm325, %v765, 0.0
    %770 = vadd.xlane.f32.xlu0 %v769
    %v771 = vpop.xlane.xlu0 %770
    %v772 = vrcp.pop %v768
    %v773 = vmul.f32 %v763, %v772
    %v774 = vrcp.pop %v771
    %v775 = vmul.f32 %v765, %v774
    %v777 = vsel %vm325, %v203, 0
    %v780 = vsel %vm325, %v773, 0
    %v783 = vsel %vm325, %v775, 0
    %785 = vmatprep.subr.mxu0 0.0
    %786 = vmatpush1.xpose.msra.mxu0 %v780
    %787 = vmatprep.subr.mxu0 0.0
    %788 = vmatpush1.xpose.msra.mxu0 %v783
    %789 = vmatprep.subr.mxu0 0.0
    %790 = vmatpush1.xpose.msra.mxu0 0.0
    %791 = vmatprep.subr.mxu0 0.0
    %792 = vmatpush1.xpose.msra.mxu0 0.0
    %793 = vmatprep.subr.mxu0 0.0
    %794 = vmatpush1.xpose.msra.mxu0 0.0
    %795 = vmatprep.subr.mxu0 0.0
    %796 = vmatpush1.xpose.msra.mxu0 0.0
    %797 = vmatprep.subr.mxu0 0.0
    %798 = vmatpush1.xpose.msra.mxu0 0.0
    %799 = vmatprep.subr.mxu0 0.0
    %800 = vmatpush1.xpose.msra.mxu0 0.0
    %801 = vmatprep.subr.mxu0 0.0
    %802 = vmatpush1.xpose.msra.mxu0 0.0
    %803 = vmatprep.subr.mxu0 0.0
    %804 = vmatpush1.xpose.msra.mxu0 0.0
    %805 = vmatprep.subr.mxu0 0.0
    %806 = vmatpush1.xpose.msra.mxu0 0.0
    %807 = vmatprep.subr.mxu0 0.0
    %808 = vmatpush1.xpose.msra.mxu0 0.0
    %809 = vmatprep.subr.mxu0 0.0
    %810 = vmatpush1.xpose.msra.mxu0 0.0
    %811 = vmatprep.subr.mxu0 0.0
    %812 = vmatpush1.xpose.msra.mxu0 0.0
    %813 = vmatprep.subr.mxu0 0.0
    %814 = vmatpush1.xpose.msra.mxu0 0.0
    %815 = vmatprep.subr.mxu0 0.0
    %816 = vmatpush1.xpose.msra.mxu0 0.0
    %817 = vmatprep.subr.mxu0 0.0
    %818 = vmatpush1.xpose.msra.mxu0 0.0
    %819 = vmatprep.subr.mxu0 0.0
    %820 = vmatpush1.xpose.msra.mxu0 0.0
    %821 = vmatprep.subr.mxu0 0.0
    %822 = vmatpush1.xpose.msra.mxu0 0.0
    %823 = vmatprep.subr.mxu0 0.0
    %824 = vmatpush1.xpose.msra.mxu0 0.0
    %825 = vmatprep.subr.mxu0 0.0
    %826 = vmatpush1.xpose.msra.mxu0 0.0
    %827 = vmatprep.subr.mxu0 0.0
    %828 = vmatpush1.xpose.msra.mxu0 0.0
    %829 = vmatprep.subr.mxu0 0.0
    %830 = vmatpush1.xpose.msra.mxu0 0.0
    %831 = vmatprep.subr.mxu0 0.0
    %832 = vmatpush1.xpose.msra.mxu0 0.0
    %833 = vmatprep.subr.mxu0 0.0
    %834 = vmatpush1.xpose.msra.mxu0 0.0
    %835 = vmatprep.subr.mxu0 0.0
    %836 = vmatpush1.xpose.msra.mxu0 0.0
    %837 = vmatprep.subr.mxu0 0.0
    %838 = vmatpush1.xpose.msra.mxu0 0.0
    %839 = vmatprep.subr.mxu0 0.0
    %840 = vmatpush1.xpose.msra.mxu0 0.0
    %841 = vmatprep.subr.mxu0 0.0
    %842 = vmatpush1.xpose.msra.mxu0 0.0
    %843 = vmatprep.subr.mxu0 0.0
    %844 = vmatpush1.xpose.msra.mxu0 0.0
    %845 = vmatprep.subr.mxu0 0.0
    %846 = vmatpush1.xpose.msra.mxu0 0.0
    %847 = vmatprep.subr.mxu0 0.0
    %848 = vmatpush1.xpose.msra.mxu0 0.0
    %849 = vmatprep.mubr.f32.mxu0 0.0
    %850 = vmatmul.mubr.f32.gmra.mrb[0].mxu0 %v777
    %v851 = vpop.f32.mrb[0].mxu0
    %v852 = vadd.f32 0.0, %v851
    %v853 = vpop.f32.mrb[0].mxu0
    %854 = vdwg.mxu0
    %855 = vxpose.xlu0.b32.start [1/16] %v168, 128
    %856 = vxpose.xlu0.b32.cont [2/16] 0.0, 128
    %857 = vxpose.xlu0.b32.cont [3/16] 0.0, 128
    %858 = vxpose.xlu0.b32.cont [4/16] 0.0, 128
    %859 = vxpose.xlu0.b32.cont [5/16] 0.0, 128
    %860 = vxpose.xlu0.b32.cont [6/16] 0.0, 128
    %861 = vxpose.xlu0.b32.cont [7/16] 0.0, 128
    %862 = vxpose.xlu0.b32.cont [8/16] 0.0, 128
    %863 = vxpose.xlu0.b32.cont [9/16] 0.0, 128
    %864 = vxpose.xlu0.b32.cont [10/16] 0.0, 128
    %865 = vxpose.xlu0.b32.cont [11/16] 0.0, 128
    %866 = vxpose.xlu0.b32.cont [12/16] 0.0, 128
    %867 = vxpose.xlu0.b32.cont [13/16] 0.0, 128
    %868 = vxpose.xlu0.b32.cont [14/16] 0.0, 128
    %869 = vxpose.xlu0.b32.cont [15/16] 0.0, 128
    %870 = vxpose.xlu0.b32.end [16/16] 0.0, 128
    %v871 = vpop.trf.xlu0
    %v872 = vpop.trf.xlu0
    %v873 = vpop.trf.xlu0
    %v874 = vpop.trf.xlu0
    %v875 = vpop.trf.xlu0
    %v876 = vpop.trf.xlu0
    %v877 = vpop.trf.xlu0
    %v878 = vpop.trf.xlu0
    %v879 = vpop.trf.xlu0
    %v880 = vpop.trf.xlu0
    %v881 = vpop.trf.xlu0
    %v882 = vpop.trf.xlu0
    %v883 = vpop.trf.xlu0
    %v884 = vpop.trf.xlu0
    %v885 = vpop.trf.xlu0
    %v886 = vpop.trf.xlu0
    %v888 = vsel %vm243, %v871, 0
    %v891 = vsel %vm243, %v872, 0
    %893 = vmatprep.subr.mxu0 0.0
    %894 = vmatpush1.msra.mxu0 %v188
    %895 = vmatprep.subr.mxu0 0.0
    %896 = vmatpush1.msra.mxu0 0.0
    %897 = vmatprep.subr.mxu0 0.0
    %898 = vmatpush1.msra.mxu0 0.0
    %899 = vmatprep.subr.mxu0 0.0
    %900 = vmatpush1.msra.mxu0 0.0
    %901 = vmatprep.subr.mxu0 0.0
    %902 = vmatpush1.msra.mxu0 0.0
    %903 = vmatprep.subr.mxu0 0.0
    %904 = vmatpush1.msra.mxu0 0.0
    %905 = vmatprep.subr.mxu0 0.0
    %906 = vmatpush1.msra.mxu0 0.0
    %907 = vmatprep.subr.mxu0 0.0
    %908 = vmatpush1.msra.mxu0 0.0
    %909 = vmatprep.subr.mxu0 0.0
    %910 = vmatpush1.msra.mxu0 0.0
    %911 = vmatprep.subr.mxu0 0.0
    %912 = vmatpush1.msra.mxu0 0.0
    %913 = vmatprep.subr.mxu0 0.0
    %914 = vmatpush1.msra.mxu0 0.0
    %915 = vmatprep.subr.mxu0 0.0
    %916 = vmatpush1.msra.mxu0 0.0
    %917 = vmatprep.subr.mxu0 0.0
    %918 = vmatpush1.msra.mxu0 0.0
    %919 = vmatprep.subr.mxu0 0.0
    %920 = vmatpush1.msra.mxu0 0.0
    %921 = vmatprep.subr.mxu0 0.0
    %922 = vmatpush1.msra.mxu0 0.0
    %923 = vmatprep.subr.mxu0 0.0
    %924 = vmatpush1.msra.mxu0 0.0
    %925 = vmatprep.subr.mxu0 0.0
    %926 = vmatpush1.msra.mxu0 0.0
    %927 = vmatprep.subr.mxu0 0.0
    %928 = vmatpush1.msra.mxu0 0.0
    %929 = vmatprep.subr.mxu0 0.0
    %930 = vmatpush1.msra.mxu0 0.0
    %931 = vmatprep.subr.mxu0 0.0
    %932 = vmatpush1.msra.mxu0 0.0
    %933 = vmatprep.subr.mxu0 0.0
    %934 = vmatpush1.msra.mxu0 0.0
    %935 = vmatprep.subr.mxu0 0.0
    %936 = vmatpush1.msra.mxu0 0.0
    %937 = vmatprep.subr.mxu0 0.0
    %938 = vmatpush1.msra.mxu0 0.0
    %939 = vmatprep.subr.mxu0 0.0
    %940 = vmatpush1.msra.mxu0 0.0
    %941 = vmatprep.subr.mxu0 0.0
    %942 = vmatpush1.msra.mxu0 0.0
    %943 = vmatprep.subr.mxu0 0.0
    %944 = vmatpush1.msra.mxu0 0.0
    %945 = vmatprep.subr.mxu0 0.0
    %946 = vmatpush1.msra.mxu0 0.0
    %947 = vmatprep.subr.mxu0 0.0
    %948 = vmatpush1.msra.mxu0 0.0
    %949 = vmatprep.subr.mxu0 0.0
    %950 = vmatpush1.msra.mxu0 0.0
    %951 = vmatprep.subr.mxu0 0.0
    %952 = vmatpush1.msra.mxu0 0.0
    %953 = vmatprep.subr.mxu0 0.0
    %954 = vmatpush1.msra.mxu0 0.0
    %955 = vmatprep.subr.mxu0 0.0
    %956 = vmatpush1.msra.mxu0 0.0
    %957 = vmatprep.mubr.f32.mxu0 0.0
    %958 = vmatmul.mubr.f32.gmra.mrb[0].mxu0 %v888
    %v959 = vpop.f32.mrb[0].mxu0
    %v960 = vadd.f32 %v29, %v959
    %v961 = vpop.f32.mrb[0].mxu0
    %962 = vmatprep.mubr.f32.mxu0 0.0
    %963 = vmatmul.mubr.f32.gmra.mrb[0].mxu0 %v891
    %v964 = vpop.f32.mrb[0].mxu0
    %v965 = vadd.f32 %v30, %v964
    %v966 = vpop.f32.mrb[0].mxu0
    %967 = vdwg.mxu0
    %v968 = vsel %vm325, %v960, -inf
    %969 = vmax.xlane.f32.xlu0 %v968
    %v970 = vpop.xlane.xlu0 %969
    %v971 = vsel %vm325, %v965, -inf
    %972 = vmax.xlane.f32.xlu0 %v971
    %v973 = vpop.xlane.xlu0 %972
    %v974 = vsub.f32 %v960, %v970
    %v975 = vsub.f32 %v965, %v973
    %v976 = vmul.f32 %v974, 1.442695
    %v977 = vpow.pop %v976
    %v978 = vmul.f32 %v975, 1.442695
    %v979 = vpow.pop %v978
    %v980 = vsel %vm325, %v977, 0.0
    %981 = vadd.xlane.f32.xlu0 %v980
    %v982 = vpop.xlane.xlu0 %981
    %v983 = vsel %vm325, %v979, 0.0
    %984 = vadd.xlane.f32.xlu0 %v983
    %v985 = vpop.xlane.xlu0 %984
    %v986 = vrcp.pop %v982
    %v987 = vmul.f32 %v977, %v986
    %v988 = vrcp.pop %v985
    %v989 = vmul.f32 %v979, %v988
    %v991 = vsel %vm325, %v208, 0
    %v994 = vsel %vm325, %v987, 0
    %v997 = vsel %vm325, %v989, 0
    %999 = vmatprep.subr.mxu0 0.0
    %1000 = vmatpush1.xpose.msra.mxu0 %v994
    %1001 = vmatprep.subr.mxu0 0.0
    %1002 = vmatpush1.xpose.msra.mxu0 %v997
    %1003 = vmatprep.subr.mxu0 0.0
    %1004 = vmatpush1.xpose.msra.mxu0 0.0
    %1005 = vmatprep.subr.mxu0 0.0
    %1006 = vmatpush1.xpose.msra.mxu0 0.0
    %1007 = vmatprep.subr.mxu0 0.0
    %1008 = vmatpush1.xpose.msra.mxu0 0.0
    %1009 = vmatprep.subr.mxu0 0.0
    %1010 = vmatpush1.xpose.msra.mxu0 0.0
    %1011 = vmatprep.subr.mxu0 0.0
    %1012 = vmatpush1.xpose.msra.mxu0 0.0
    %1013 = vmatprep.subr.mxu0 0.0
    %1014 = vmatpush1.xpose.msra.mxu0 0.0
    %1015 = vmatprep.subr.mxu0 0.0
    %1016 = vmatpush1.xpose.msra.mxu0 0.0
    %1017 = vmatprep.subr.mxu0 0.0
    %1018 = vmatpush1.xpose.msra.mxu0 0.0
    %1019 = vmatprep.subr.mxu0 0.0
    %1020 = vmatpush1.xpose.msra.mxu0 0.0
    %1021 = vmatprep.subr.mxu0 0.0
    %1022 = vmatpush1.xpose.msra.mxu0 0.0
    %1023 = vmatprep.subr.mxu0 0.0
    %1024 = vmatpush1.xpose.msra.mxu0 0.0
    %1025 = vmatprep.subr.mxu0 0.0
    %1026 = vmatpush1.xpose.msra.mxu0 0.0
    %1027 = vmatprep.subr.mxu0 0.0
    %1028 = vmatpush1.xpose.msra.mxu0 0.0
    %1029 = vmatprep.subr.mxu0 0.0
    %1030 = vmatpush1.xpose.msra.mxu0 0.0
    %1031 = vmatprep.subr.mxu0 0.0
    %1032 = vmatpush1.xpose.msra.mxu0 0.0
    %1033 = vmatprep.subr.mxu0 0.0
    %1034 = vmatpush1.xpose.msra.mxu0 0.0
    %1035 = vmatprep.subr.mxu0 0.0
    %1036 = vmatpush1.xpose.msra.mxu0 0.0
    %1037 = vmatprep.subr.mxu0 0.0
    %1038 = vmatpush1.xpose.msra.mxu0 0.0
    %1039 = vmatprep.subr.mxu0 0.0
    %1040 = vmatpush1.xpose.msra.mxu0 0.0
    %1041 = vmatprep.subr.mxu0 0.0
    %1042 = vmatpush1.xpose.msra.mxu0 0.0
    %1043 = vmatprep.subr.mxu0 0.0
    %1044 = vmatpush1.xpose.msra.mxu0 0.0
    %1045 = vmatprep.subr.mxu0 0.0
    %1046 = vmatpush1.xpose.msra.mxu0 0.0
    %1047 = vmatprep.subr.mxu0 0.0
    %1048 = vmatpush1.xpose.msra.mxu0 0.0
    %1049 = vmatprep.subr.mxu0 0.0
    %1050 = vmatpush1.xpose.msra.mxu0 0.0
    %1051 = vmatprep.subr.mxu0 0.0
    %1052 = vmatpush1.xpose.msra.mxu0 0.0
    %1053 = vmatprep.subr.mxu0 0.0
    %1054 = vmatpush1.xpose.msra.mxu0 0.0
    %1055 = vmatprep.subr.mxu0 0.0
    %1056 = vmatpush1.xpose.msra.mxu0 0.0
    %1057 = vmatprep.subr.mxu0 0.0
    %1058 = vmatpush1.xpose.msra.mxu0 0.0
    %1059 = vmatprep.subr.mxu0 0.0
    %1060 = vmatpush1.xpose.msra.mxu0 0.0
    %1061 = vmatprep.subr.mxu0 0.0
    %1062 = vmatpush1.xpose.msra.mxu0 0.0
    %1063 = vmatprep.mubr.f32.mxu0 0.0
    %1064 = vmatmul.mubr.f32.gmra.mrb[0].mxu0 %v991
    %v1065 = vpop.f32.mrb[0].mxu0
    %v1066 = vadd.f32 0.0, %v1065
    %v1067 = vpop.f32.mrb[0].mxu0
    %1068 = vdwg.mxu0
    %1069 = vxpose.xlu0.b32.start [1/16] %v424, 128
    %1070 = vxpose.xlu0.b32.cont [2/16] %v638, 128
    %1071 = vxpose.xlu0.b32.cont [3/16] %v852, 128
    %1072 = vxpose.xlu0.b32.cont [4/16] %v1066, 128
    %1073 = vxpose.xlu0.b32.cont [5/16] 0.0, 128
    %1074 = vxpose.xlu0.b32.cont [6/16] 0.0, 128
    %1075 = vxpose.xlu0.b32.cont [7/16] 0.0, 128
    %1076 = vxpose.xlu0.b32.cont [8/16] 0.0, 128
    %1077 = vxpose.xlu0.b32.cont [9/16] 0.0, 128
    %1078 = vxpose.xlu0.b32.cont [10/16] 0.0, 128
    %1079 = vxpose.xlu0.b32.cont [11/16] 0.0, 128
    %1080 = vxpose.xlu0.b32.cont [12/16] 0.0, 128
    %1081 = vxpose.xlu0.b32.cont [13/16] 0.0, 128
    %1082 = vxpose.xlu0.b32.cont [14/16] 0.0, 128
    %1083 = vxpose.xlu0.b32.cont [15/16] 0.0, 128
    %1084 = vxpose.xlu0.b32.end [16/16] 0.0, 128
    %v1085 = vpop.trf.xlu0
    %v1086 = vpop.trf.xlu0
    %v1087 = vpop.trf.xlu0
    %v1088 = vpop.trf.xlu0
    %v1089 = vpop.trf.xlu0
    %v1090 = vpop.trf.xlu0
    %v1091 = vpop.trf.xlu0
    %v1092 = vpop.trf.xlu0
    %v1093 = vpop.trf.xlu0
    %v1094 = vpop.trf.xlu0
    %v1095 = vpop.trf.xlu0
    %v1096 = vpop.trf.xlu0
    %v1097 = vpop.trf.xlu0
    %v1098 = vpop.trf.xlu0
    %v1099 = vpop.trf.xlu0
    %v1100 = vpop.trf.xlu0
    %v1101 = vld [vmem:[%s2] sm:$0xff]
    %v1102 = vld [vmem:[%s2 + $0x8] sm:$0xff]
    %v1103 = vld [vmem:[%s2 + $0x10] sm:$0xff]
    %v1104 = vld [vmem:[%s2 + $0x18] sm:$0xff]
    %v1106 = vsel %vm43, %v1085, 0
    %v1109 = vsel %vm43, %v1086, 0
    %1111 = vmatprep.subr.mxu0 0.0
    %1112 = vmatpush1.msra.mxu0 %v1101
    %1113 = vmatprep.subr.mxu0 0.0
    %1114 = vmatpush1.msra.mxu0 %v1102
    %1115 = vmatprep.subr.mxu0 0.0
    %1116 = vmatpush1.msra.mxu0 %v1103
    %1117 = vmatprep.subr.mxu0 0.0
    %1118 = vmatpush1.msra.mxu0 %v1104
    %1119 = vmatprep.subr.mxu0 0.0
    %1120 = vmatpush1.msra.mxu0 0.0
    %1121 = vmatprep.subr.mxu0 0.0
    %1122 = vmatpush1.msra.mxu0 0.0
    %1123 = vmatprep.subr.mxu0 0.0
    %1124 = vmatpush1.msra.mxu0 0.0
    %1125 = vmatprep.subr.mxu0 0.0
    %1126 = vmatpush1.msra.mxu0 0.0
    %1127 = vmatprep.subr.mxu0 0.0
    %1128 = vmatpush1.msra.mxu0 0.0
    %1129 = vmatprep.subr.mxu0 0.0
    %1130 = vmatpush1.msra.mxu0 0.0
    %1131 = vmatprep.subr.mxu0 0.0
    %1132 = vmatpush1.msra.mxu0 0.0
    %1133 = vmatprep.subr.mxu0 0.0
    %1134 = vmatpush1.msra.mxu0 0.0
    %1135 = vmatprep.subr.mxu0 0.0
    %1136 = vmatpush1.msra.mxu0 0.0
    %1137 = vmatprep.subr.mxu0 0.0
    %1138 = vmatpush1.msra.mxu0 0.0
    %1139 = vmatprep.subr.mxu0 0.0
    %1140 = vmatpush1.msra.mxu0 0.0
    %1141 = vmatprep.subr.mxu0 0.0
    %1142 = vmatpush1.msra.mxu0 0.0
    %1143 = vmatprep.subr.mxu0 0.0
    %1144 = vmatpush1.msra.mxu0 0.0
    %1145 = vmatprep.subr.mxu0 0.0
    %1146 = vmatpush1.msra.mxu0 0.0
    %1147 = vmatprep.subr.mxu0 0.0
    %1148 = vmatpush1.msra.mxu0 0.0
    %1149 = vmatprep.subr.mxu0 0.0
    %1150 = vmatpush1.msra.mxu0 0.0
    %1151 = vmatprep.subr.mxu0 0.0
    %1152 = vmatpush1.msra.mxu0 0.0
    %1153 = vmatprep.subr.mxu0 0.0
    %1154 = vmatpush1.msra.mxu0 0.0
    %1155 = vmatprep.subr.mxu0 0.0
    %1156 = vmatpush1.msra.mxu0 0.0
    %1157 = vmatprep.subr.mxu0 0.0
    %1158 = vmatpush1.msra.mxu0 0.0
    %1159 = vmatprep.subr.mxu0 0.0
    %1160 = vmatpush1.msra.mxu0 0.0
    %1161 = vmatprep.subr.mxu0 0.0
    %1162 = vmatpush1.msra.mxu0 0.0
    %1163 = vmatprep.subr.mxu0 0.0
    %1164 = vmatpush1.msra.mxu0 0.0
    %1165 = vmatprep.subr.mxu0 0.0
    %1166 = vmatpush1.msra.mxu0 0.0
    %1167 = vmatprep.subr.mxu0 0.0
    %1168 = vmatpush1.msra.mxu0 0.0
    %1169 = vmatprep.subr.mxu0 0.0
    %1170 = vmatpush1.msra.mxu0 0.0
    %1171 = vmatprep.subr.mxu0 0.0
    %1172 = vmatpush1.msra.mxu0 0.0
    %1173 = vmatprep.subr.mxu0 0.0
    %1174 = vmatpush1.msra.mxu0 0.0
    %1175 = vmatprep.mubr.f32.mxu0 0.0
    %1176 = vmatmul.mubr.f32.gmra.mrb[0].mxu0 %v1106
    %v1177 = vpop.f32.mrb[0].mxu0
    %v1178 = vadd.f32 0.0, %v1177
    %v1179 = vpop.f32.mrb[0].mxu0
    %1180 = vmatprep.mubr.f32.mxu0 0.0
    %1181 = vmatmul.mubr.f32.gmra.mrb[0].mxu0 %v1109
    %v1182 = vpop.f32.mrb[0].mxu0
    %v1183 = vadd.f32 0.0, %v1182
    %v1184 = vpop.f32.mrb[0].mxu0
    %1185 = vdwg.mxu0
    %v1186 = vld [vmem:[%s6] sm:$0x3f]
    %v1187 = vadd.f32 %v27, %v1178
    %v1188 = vadd.f32 %v28, %v1183
    %v1189 = vsel %vm43, %v1187, 0.0
    %1190 = vadd.xlane.f32.xlu0 %v1189
    %v1191 = vpop.xlane.xlu0 %1190
    %v1192 = vsel %vm43, %v1188, 0.0
    %1193 = vadd.xlane.f32.xlu0 %v1192
    %v1194 = vpop.xlane.xlu0 %1193
    %v1195 = vrcp.pop 32.0
    %v1196 = vmul.f32 %v1191, %v1195
    %v1197 = vmul.f32 %v1194, %v1195
    %v1198 = vsub.f32 %v1187, %v1196
    %v1199 = vsub.f32 %v1188, %v1197
    %v1200 = vmul.f32 %v1198, %v1198
    %v1201 = vmul.f32 %v1199, %v1199
    %v1202 = vsel %vm43, %v1200, 0.0
    %1203 = vadd.xlane.f32.xlu0 %v1202
    %v1204 = vpop.xlane.xlu0 %1203
    %v1205 = vsel %vm43, %v1201, 0.0
    %1206 = vadd.xlane.f32.xlu0 %v1205
    %v1207 = vpop.xlane.xlu0 %1206
    %v1208 = vmul.f32 %v1204, %v1195
    %v1209 = vmul.f32 %v1207, %v1195
    %v1210 = vadd.f32 %v1208, 1e-05
    %v1211 = vadd.f32 %v1209, 1e-05
    %v1212 = vrsqrt.pop %v1210
    %v1213 = vrsqrt.pop %v1211
    %v1214 = vmul.f32 %v1198, %v1212
    %v1215 = vmul.f32 %v1199, %v1213
    %v1216 = vlaneseq
    %v1217 = vshrl.u32 %v1216, 7
    %v1218 = vsub.s32 0, %v1217
    %v1219 = vrot.slane %v1186, %v1218
    %v1220 = vmul.f32 %v1214, %v1219
    %v1221 = vmul.f32 %v1215, %v1219
    %v1222 = vlaneseq
    %v1223 = vshrl.u32 %v1222, 7
    %v1224 = vsub.s32 1, %v1223
    %v1225 = vrot.slane %v1186, %v1224
    %v1226 = vadd.f32 %v1220, %v1225
    %v1227 = vadd.f32 %v1221, %v1225
    %v1228 = vld [vmem:[%s3] sm:$0xff]
    %v1229 = vld [vmem:[%s3 + $0x8] sm:$0xff]
    %v1230 = vld [vmem:[%s3 + $0x10] sm:$0xff]
    %v1231 = vld [vmem:[%s3 + $0x18] sm:$0xff]
    %v1232 = vlaneseq
    %v1233 = vshrl.u32 %v1232, 7
    %v1234 = vsub.s32 2, %v1233
    %v1235 = vrot.slane %v1186, %v1234
    %v1237 = vsel %vm43, %v1226, 0
    %v1240 = vsel %vm43, %v1227, 0
    %1242 = vmatprep.subr.mxu0 0.0
    %1243 = vmatpush1.msra.mxu0 %v1228
    %1244 = vmatprep.subr.mxu0 0.0
    %1245 = vmatpush1.msra.mxu0 %v1229
    %1246 = vmatprep.subr.mxu0 0.0
    %1247 = vmatpush1.msra.mxu0 %v1230
    %1248 = vmatprep.subr.mxu0 0.0
    %1249 = vmatpush1.msra.mxu0 %v1231
    %1250 = vmatprep.subr.mxu0 0.0
    %1251 = vmatpush1.msra.mxu0 0.0
    %1252 = vmatprep.subr.mxu0 0.0
    %1253 = vmatpush1.msra.mxu0 0.0
    %1254 = vmatprep.subr.mxu0 0.0
    %1255 = vmatpush1.msra.mxu0 0.0
    %1256 = vmatprep.subr.mxu0 0.0
    %1257 = vmatpush1.msra.mxu0 0.0
    %1258 = vmatprep.subr.mxu0 0.0
    %1259 = vmatpush1.msra.mxu0 0.0
    %1260 = vmatprep.subr.mxu0 0.0
    %1261 = vmatpush1.msra.mxu0 0.0
    %1262 = vmatprep.subr.mxu0 0.0
    %1263 = vmatpush1.msra.mxu0 0.0
    %1264 = vmatprep.subr.mxu0 0.0
    %1265 = vmatpush1.msra.mxu0 0.0
    %1266 = vmatprep.subr.mxu0 0.0
    %1267 = vmatpush1.msra.mxu0 0.0
    %1268 = vmatprep.subr.mxu0 0.0
    %1269 = vmatpush1.msra.mxu0 0.0
    %1270 = vmatprep.subr.mxu0 0.0
    %1271 = vmatpush1.msra.mxu0 0.0
    %1272 = vmatprep.subr.mxu0 0.0
    %1273 = vmatpush1.msra.mxu0 0.0
    %1274 = vmatprep.subr.mxu0 0.0
    %1275 = vmatpush1.msra.mxu0 0.0
    %1276 = vmatprep.subr.mxu0 0.0
    %1277 = vmatpush1.msra.mxu0 0.0
    %1278 = vmatprep.subr.mxu0 0.0
    %1279 = vmatpush1.msra.mxu0 0.0
    %1280 = vmatprep.subr.mxu0 0.0
    %1281 = vmatpush1.msra.mxu0 0.0
    %1282 = vmatprep.subr.mxu0 0.0
    %1283 = vmatpush1.msra.mxu0 0.0
    %1284 = vmatprep.subr.mxu0 0.0
    %1285 = vmatpush1.msra.mxu0 0.0
    %1286 = vmatprep.subr.mxu0 0.0
    %1287 = vmatpush1.msra.mxu0 0.0
    %1288 = vmatprep.subr.mxu0 0.0
    %1289 = vmatpush1.msra.mxu0 0.0
    %1290 = vmatprep.subr.mxu0 0.0
    %1291 = vmatpush1.msra.mxu0 0.0
    %1292 = vmatprep.subr.mxu0 0.0
    %1293 = vmatpush1.msra.mxu0 0.0
    %1294 = vmatprep.subr.mxu0 0.0
    %1295 = vmatpush1.msra.mxu0 0.0
    %1296 = vmatprep.subr.mxu0 0.0
    %1297 = vmatpush1.msra.mxu0 0.0
    %1298 = vmatprep.subr.mxu0 0.0
    %1299 = vmatpush1.msra.mxu0 0.0
    %1300 = vmatprep.subr.mxu0 0.0
    %1301 = vmatpush1.msra.mxu0 0.0
    %1302 = vmatprep.subr.mxu0 0.0
    %1303 = vmatpush1.msra.mxu0 0.0
    %1304 = vmatprep.subr.mxu0 0.0
    %1305 = vmatpush1.msra.mxu0 0.0
    %1306 = vmatprep.mubr.f32.mxu0 0.0
    %1307 = vmatmul.mubr.f32.gmra.mrb[0].mxu0 %v1237
    %v1308 = vpop.f32.mrb[0].mxu0
    %v1309 = vadd.f32 %v1235, %v1308
    %v1310 = vpop.f32.mrb[0].mxu0
    %1311 = vmatprep.mubr.f32.mxu0 0.0
    %1312 = vmatmul.mubr.f32.gmra.mrb[0].mxu0 %v1240
    %v1313 = vpop.f32.mrb[0].mxu0
    %v1314 = vadd.f32 %v1235, %v1313
    %v1315 = vpop.f32.mrb[0].mxu0
    %1316 = vdwg.mxu0
    %v1317 = vmax.f32 %v1309, 0.0
    %v1318 = vmax.f32 %v1314, 0.0
    %v1319 = vld [vmem:[%s4] sm:$0xff]
    %v1320 = vld [vmem:[%s4 + $0x8] sm:$0xff]
    %v1321 = vld [vmem:[%s4 + $0x10] sm:$0xff]
    %v1322 = vld [vmem:[%s4 + $0x18] sm:$0xff]
    %v1323 = vld [vmem:[%s4 + $0x20] sm:$0xff]
    %v1324 = vld [vmem:[%s4 + $0x28] sm:$0xff]
    %v1325 = vld [vmem:[%s4 + $0x30] sm:$0xff]
    %v1326 = vld [vmem:[%s4 + $0x38] sm:$0xff]
    %v1327 = vlaneseq
    %v1328 = vshrl.u32 %v1327, 7
    %v1329 = vsub.s32 3, %v1328
    %v1330 = vrot.slane %v1186, %v1329
    %vm1331 = vcmask 523264
    %v1333 = vsel %vm1331, %v1317, 0
    %v1336 = vsel %vm1331, %v1318, 0
    %1338 = vmatprep.subr.mxu0 0.0
    %1339 = vmatpush1.msra.mxu0 %v1319
    %1340 = vmatprep.subr.mxu0 0.0
    %1341 = vmatpush1.msra.mxu0 %v1320
    %1342 = vmatprep.subr.mxu0 0.0
    %1343 = vmatpush1.msra.mxu0 %v1321
    %1344 = vmatprep.subr.mxu0 0.0
    %1345 = vmatpush1.msra.mxu0 %v1322
    %1346 = vmatprep.subr.mxu0 0.0
    %1347 = vmatpush1.msra.mxu0 %v1323
    %1348 = vmatprep.subr.mxu0 0.0
    %1349 = vmatpush1.msra.mxu0 %v1324
    %1350 = vmatprep.subr.mxu0 0.0
    %1351 = vmatpush1.msra.mxu0 %v1325
    %1352 = vmatprep.subr.mxu0 0.0
    %1353 = vmatpush1.msra.mxu0 %v1326
    %1354 = vmatprep.subr.mxu0 0.0
    %1355 = vmatpush1.msra.mxu0 0.0
    %1356 = vmatprep.subr.mxu0 0.0
    %1357 = vmatpush1.msra.mxu0 0.0
    %1358 = vmatprep.subr.mxu0 0.0
    %1359 = vmatpush1.msra.mxu0 0.0
    %1360 = vmatprep.subr.mxu0 0.0
    %1361 = vmatpush1.msra.mxu0 0.0
    %1362 = vmatprep.subr.mxu0 0.0
    %1363 = vmatpush1.msra.mxu0 0.0
    %1364 = vmatprep.subr.mxu0 0.0
    %1365 = vmatpush1.msra.mxu0 0.0
    %1366 = vmatprep.subr.mxu0 0.0
    %1367 = vmatpush1.msra.mxu0 0.0
    %1368 = vmatprep.subr.mxu0 0.0
    %1369 = vmatpush1.msra.mxu0 0.0
    %1370 = vmatprep.subr.mxu0 0.0
    %1371 = vmatpush1.msra.mxu0 0.0
    %1372 = vmatprep.subr.mxu0 0.0
    %1373 = vmatpush1.msra.mxu0 0.0
    %1374 = vmatprep.subr.mxu0 0.0
    %1375 = vmatpush1.msra.mxu0 0.0
    %1376 = vmatprep.subr.mxu0 0.0
    %1377 = vmatpush1.msra.mxu0 0.0
    %1378 = vmatprep.subr.mxu0 0.0
    %1379 = vmatpush1.msra.mxu0 0.0
    %1380 = vmatprep.subr.mxu0 0.0
    %1381 = vmatpush1.msra.mxu0 0.0
    %1382 = vmatprep.subr.mxu0 0.0
    %1383 = vmatpush1.msra.mxu0 0.0
    %1384 = vmatprep.subr.mxu0 0.0
    %1385 = vmatpush1.msra.mxu0 0.0
    %1386 = vmatprep.subr.mxu0 0.0
    %1387 = vmatpush1.msra.mxu0 0.0
    %1388 = vmatprep.subr.mxu0 0.0
    %1389 = vmatpush1.msra.mxu0 0.0
    %1390 = vmatprep.subr.mxu0 0.0
    %1391 = vmatpush1.msra.mxu0 0.0
    %1392 = vmatprep.subr.mxu0 0.0
    %1393 = vmatpush1.msra.mxu0 0.0
    %1394 = vmatprep.subr.mxu0 0.0
    %1395 = vmatpush1.msra.mxu0 0.0
    %1396 = vmatprep.subr.mxu0 0.0
    %1397 = vmatpush1.msra.mxu0 0.0
    %1398 = vmatprep.subr.mxu0 0.0
    %1399 = vmatpush1.msra.mxu0 0.0
    %1400 = vmatprep.subr.mxu0 0.0
    %1401 = vmatpush1.msra.mxu0 0.0
    %1402 = vmatprep.mubr.f32.mxu0 0.0
    %1403 = vmatmul.mubr.f32.gmra.mrb[0].mxu0 %v1333
    %v1404 = vpop.f32.mrb[0].mxu0
    %v1405 = vadd.f32 %v1330, %v1404
    %v1406 = vpop.f32.mrb[0].mxu0
    %1407 = vmatprep.mubr.f32.mxu0 0.0
    %1408 = vmatmul.mubr.f32.gmra.mrb[0].mxu0 %v1336
    %v1409 = vpop.f32.mrb[0].mxu0
    %v1410 = vadd.f32 %v1330, %v1409
    %v1411 = vpop.f32.mrb[0].mxu0
    %1412 = vdwg.mxu0
    %v1413 = vadd.f32 %v1226, %v1405
    %v1414 = vadd.f32 %v1227, %v1410
    %v1415 = vsel %vm43, %v1413, 0.0
    %1416 = vadd.xlane.f32.xlu0 %v1415
    %v1417 = vpop.xlane.xlu0 %1416
    %v1418 = vsel %vm43, %v1414, 0.0
    %1419 = vadd.xlane.f32.xlu0 %v1418
    %v1420 = vpop.xlane.xlu0 %1419
    %v1421 = vmul.f32 %v1417, %v1195
    %v1422 = vmul.f32 %v1420, %v1195
    %v1423 = vsub.f32 %v1413, %v1421
    %v1424 = vsub.f32 %v1414, %v1422
    %v1425 = vmul.f32 %v1423, %v1423
    %v1426 = vmul.f32 %v1424, %v1424
    %v1427 = vsel %vm43, %v1425, 0.0
    %1428 = vadd.xlane.f32.xlu0 %v1427
    %v1429 = vpop.xlane.xlu0 %1428
    %v1430 = vsel %vm43, %v1426, 0.0
    %1431 = vadd.xlane.f32.xlu0 %v1430
    %v1432 = vpop.xlane.xlu0 %1431
    %v1433 = vmul.f32 %v1429, %v1195
    %v1434 = vmul.f32 %v1432, %v1195
    %v1435 = vadd.f32 %v1433, 1e-05
    %v1436 = vadd.f32 %v1434, 1e-05
    %v1437 = vrsqrt.pop %v1435
    %v1438 = vrsqrt.pop %v1436
    %v1439 = vmul.f32 %v1423, %v1437
    %v1440 = vmul.f32 %v1424, %v1438
    %v1441 = vlaneseq
    %v1442 = vshrl.u32 %v1441, 7
    %v1443 = vsub.s32 4, %v1442
    %v1444 = vrot.slane %v1186, %v1443
    %v1445 = vmul.f32 %v1439, %v1444
    %v1446 = vmul.f32 %v1440, %v1444
    %v1447 = vlaneseq
    %v1448 = vshrl.u32 %v1447, 7
    %v1449 = vsub.s32 5, %v1448
    %v1450 = vrot.slane %v1186, %v1449
    %v1451 = vadd.f32 %v1445, %v1450
    %v1452 = vadd.f32 %v1446, %v1450
    %1453 = vst.msk [vmem:[#allocation2] sm:$0xff] %vm43, %v1451
    %1454 = vst.msk [vmem:[#allocation2 + $0x8] sm:$0xff] %vm43, %v1452
    // Predicated region
    $region30: #{transformer_encoder_block.1} parent=1 // pred_check
      _
    $region31: #{transformer_encoder_block.1} parent=1 // pred_check_branch
      %1456 = sbr.rel (0) target = $region33
    $region32: #{transformer_encoder_block.1} parent=1 // pred_region
      %s1458 = ssub.s32 256, 256
      %1459 = vsyncadd [#allocation3], %s1458
      %s1460 = sshll.u32 [#allocation2], 4
      %s1461 = int_to_ptr.vmem [resolvable:$true] %s1460
      %1466 = dma.vmem_to_hbm [thread:$0]  %s1461, 256, %s7, [#allocation3], 128, 128, 8
    $region33: #{transformer_encoder_block.1} parent=1 // pred_fallthru
      _
    // Predicated region
    $region34: #{transformer_encoder_block.1} parent=1 // pred_check
      _
    $region35: #{transformer_encoder_block.1} parent=1 // pred_check_branch
      %1468 = sbr.rel (0) target = $region37
    $region36: #{transformer_encoder_block.1} parent=1 // pred_region
      %1469 = dma.done [#allocation3], 256
    $region37: #{transformer_encoder_block.1} parent=1 // pred_fallthru
      _
    %1470 = vsyncpa [#allocation3], 1

</llo_original>
